<compile_context>
chip_gen: v7x
topology: tpu7x:2x2x1
jax: 0.10.0
libtpu: 0.0.40
codegen_flags: <defaults>
</compile_context>

<pallas_src>
import functools

import numpy as np
import jax
import jax.numpy as jnp
from jax import lax
from jax.experimental import pallas as pl
from jax.experimental.pallas import tpu as pltpu


_NEG = float(np.finfo(np.float32).min)   # finite "-inf" init for max-reduce


def _round_up(x, m):
    return ((x + m - 1) // m) * m


def _grid_pool_kernel(blk_base_ref, blk_nt_ref, win_g0_ref, win_ng_ref,  # SMEM
                      feat_ref, cid_ref, w_ref, b_ref,                   # VMEM in
                      out_ref,                                           # VMEM out
                      *, win_rows):
    """One (cluster-block, channel-tile, point-tile) step of Linear + seg-max.

    feat_ref: (TILE_N, C_in_pad)   bf16  block-packed point features
    cid_ref:  (TILE_N, 1)          int32 block-LOCAL cluster id per point
    w_ref:    (C_in_pad, TILE_C)   bf16  Linear weight (transposed)
    b_ref:    (1, TILE_C)          f32   Linear bias (added once at finalize)
    out_ref:  (TILE_M + 8, TILE_C) f32   resident per-(block, channel-tile) max
    """
    mb = pl.program_id(0)                 # cluster block      (parallel)
    t = pl.program_id(2)                  # point tile in block (reduction)
    nt = blk_nt_ref[mb]                   # number of real tiles in this block
    n_win = feat_ref.shape[0] // win_rows

    @pl.when(t == 0)
    def _init():
        out_ref[...] = jnp.full(out_ref.shape, _NEG, dtype=out_ref.dtype)

    @pl.when(t < nt)                      # skip padded tiles of short blocks
    def _compute():
        # ---- Linear projection on the MXU (bf16 operands, f32 accumulate) ----
        proj = jnp.dot(feat_ref[...], w_ref[...],
                       preferred_element_type=jnp.float32)   # (TILE_N, TILE_C)
        cids = cid_ref[...]                                   # (TILE_N, 1)
        gtile = blk_base_ref[mb] + t                          # global tile index

        # ---- segment-max restricted to each row-window's cluster groups ----
        for w in range(n_win):                                # static unroll
            r0 = w * win_rows
            pw = proj[r0:r0 + win_rows, :]                    # (W, TILE_C)
            cw = cids[r0:r0 + win_rows, :]                    # (W, 1)
            widx = gtile * n_win + w
            g0 = win_g0_ref[widx]                             # first 8-group
            ng = win_ng_ref[widx]                             # groups touched

            def group_body(g, carry):
                base = pl.multiple_of((g0 + g) * 8, 8)        # 8-aligned row
                rows = [
                    jnp.max(jnp.where(cw == base + j, pw, _NEG),
                            axis=0, keepdims=True)            # (1, TILE_C)
                    for j in range(8)                         # static unroll
                ]
                blk = jnp.concatenate(rows, axis=0)           # (8, TILE_C)
                cur = out_ref[pl.ds(base, 8), :]
                out_ref[pl.ds(base, 8), :] = jnp.maximum(cur, blk)
                return carry

            lax.fori_loop(0, ng, group_body, 0)

    @pl.when(t == nt - 1)
    def _finalize():
        # bias once per block; padded / spare rows are sliced off host-side.
        out_ref[...] = out_ref[...] + b_ref[...]


def grid_pool_feat(feat_sorted, cluster_sorted, weight_t, bias, num_clusters,
                   *, tile_n=128, tile_m=120, win_rows=32):
    """pooled[m] = max_{i : cluster_sorted[i] == m} (feat_sorted[i] @ W) + b.

    `feat_sorted` / `cluster_sorted` must be sorted by cluster id (CSR order).
    """
    assert tile_m % 8 == 0 and tile_n % win_rows == 0 and win_rows % 8 == 0
    feat_sorted = np.asarray(feat_sorted, dtype=np.float32)
    cluster_sorted = np.asarray(cluster_sorted, dtype=np.int32)
    weight_t = np.asarray(weight_t, dtype=np.float32)
    bias = np.asarray(bias, dtype=np.float32)

    n, c_in = feat_sorted.shape
    c_out = weight_t.shape[1]
    c_in_pad = _round_up(c_in, 128)
    c_out_pad = _round_up(c_out, 128)
    if c_out_pad <= 512:
        tile_c = c_out_pad            # single channel tile: feat streamed once
    else:
        tile_c = 256
        c_out_pad = _round_up(c_out_pad, tile_c)
    n_ct = c_out_pad // tile_c

    # ---- CSR over clusters (points already sorted by cluster id) ----
    counts = np.bincount(cluster_sorted, minlength=num_clusters)
    csr = np.zeros(num_clusters + 1, dtype=np.int64)
    csr[1:] = np.cumsum(counts)

    n_blocks = max(1, (num_clusters + tile_m - 1) // tile_m)
    m_rows = tile_m + 8               # spare 8-row group for in-tile pad points

    blk_base = np.zeros(n_blocks, dtype=np.int32)
    blk_nt = np.zeros(n_blocks, dtype=np.int32)
    spans = []
    total_tiles = 0
    for mb in range(n_blocks):
        c_lo = mb * tile_m
        c_hi = min(c_lo + tile_m, num_clusters)
        p_lo, p_hi = int(csr[c_lo]), int(csr[c_hi])
        nt = max(1, (p_hi - p_lo + tile_n - 1) // tile_n)
        blk_base[mb] = total_tiles
        blk_nt[mb] = nt
        spans.append((c_lo, c_hi, p_lo, p_hi, nt))
        total_tiles += nt
    max_tiles = int(blk_nt.max())

    # ---- pack points per cluster block into tile-aligned slabs ----
    n_rows = total_tiles * tile_n
    feat_p = np.zeros((n_rows, c_in_pad), dtype=np.float32)
    cid_p = np.zeros((n_rows, 1), dtype=np.int32)
    for mb, (c_lo, c_hi, p_lo, p_hi, nt) in enumerate(spans):
        r0 = int(blk_base[mb]) * tile_n
        npts = p_hi - p_lo
        feat_p[r0:r0 + npts, :c_in] = feat_sorted[p_lo:p_hi]
        cid_p[r0:r0 + npts, 0] = cluster_sorted[p_lo:p_hi] - c_lo   # local ids
        cid_p[r0 + npts:r0 + nt * tile_n, 0] = c_hi - c_lo          # pad -> spare

    # Per row-window first / count of touched 8-cluster groups (valid because
    # rows are CSR-sorted per block and windows never straddle block slabs).
    n_win = tile_n // win_rows
    cid_w = cid_p.reshape(total_tiles * n_win, win_rows)
    win_g0 = (cid_w[:, 0] // 8).astype(np.int32)
    win_ng = (cid_w[:, -1] // 8 - cid_w[:, 0] // 8 + 1).astype(np.int32)

    w_p = np.zeros((c_in_pad, c_out_pad), dtype=np.float32)
    w_p[:c_in, :c_out] = weight_t
    b_p = np.zeros((1, c_out_pad), dtype=np.float32)
    b_p[0, :c_out] = bias

    grid = (n_blocks, n_ct, max_tiles)
    kernel = functools.partial(_grid_pool_kernel, win_rows=win_rows)

    out = pl.pallas_call(
        kernel,
        out_shape=jax.ShapeDtypeStruct((n_blocks * m_rows, c_out_pad), jnp.float32),
        grid_spec=pltpu.PrefetchScalarGridSpec(
            num_scalar_prefetch=4,
            grid=grid,
            in_specs=[
                pl.BlockSpec((tile_n, c_in_pad),
                             lambda mb, co, t, base, nt, g0, ng:
                                 (base[mb] + jnp.minimum(t, nt[mb] - 1), 0)),
                pl.BlockSpec((tile_n, 1),
                             lambda mb, co, t, base, nt, g0, ng:
                                 (base[mb] + jnp.minimum(t, nt[mb] - 1), 0)),
                pl.BlockSpec((c_in_pad, tile_c),
                             lambda mb, co, t, base, nt, g0, ng: (0, co)),
                pl.BlockSpec((1, tile_c),
                             lambda mb, co, t, base, nt, g0, ng: (0, co)),
            ],
            out_specs=pl.BlockSpec((m_rows, tile_c),
                                   lambda mb, co, t, base, nt, g0, ng: (mb, co)),
        ),
        compiler_params=pltpu.CompilerParams(
            dimension_semantics=("parallel", "parallel", "arbitrary"),
            vmem_limit_bytes=32 * 1024 * 1024,   # safe on v5e / v6e / v7x
        ),
    )(
        jnp.asarray(blk_base),
        jnp.asarray(blk_nt),
        jnp.asarray(win_g0),
        jnp.asarray(win_ng),
        jnp.asarray(feat_p, dtype=jnp.bfloat16),   # MXU operands in bf16
        jnp.asarray(cid_p),
        jnp.asarray(w_p, dtype=jnp.bfloat16),
        jnp.asarray(b_p),
    )

    # Drop spare rows / padded clusters / padded channels (device-side slices).
    pooled = out.reshape(n_blocks, m_rows, c_out_pad)[:, :tile_m, :]
    pooled = pooled.reshape(n_blocks * tile_m, c_out_pad)[:num_clusters, :c_out]
    return pooled


def grid_pooling_forward(feat, coord, grid_coord, batch, weight, bias, stride=2):
    """Reproduces GridPooling.forward (reduce='max') minus serialization/sparsify."""
    # --- glue: voxelization + unique clusters (host-side, matches torch.unique) ---
    gc = np.asarray(grid_coord, dtype=np.int64) // stride
    b = np.asarray(batch, dtype=np.int64)
    keys = np.concatenate([b[:, None], gc], axis=1)
    uniq, inverse, counts = np.unique(
        keys, axis=0, return_inverse=True, return_counts=True
    )
    inverse = inverse.reshape(-1).astype(np.int64)
    num_clusters = int(uniq.shape[0])

    # CSR-style reordering: sort points by cluster id.
    order = np.argsort(inverse, kind="stable")
    feat_np = np.asarray(feat, dtype=np.float32)
    feat_sorted = feat_np[order]
    cluster_sorted = inverse[order].astype(np.int32)

    # --- hot path: Linear projection + segment-max, fused in the Pallas kernel ---
    pooled_feat = grid_pool_feat(
        feat_sorted,
        cluster_sorted,
        np.asarray(weight, dtype=np.float32).T,   # (C_in, C_out)
        np.asarray(bias, dtype=np.float32),
        num_clusters,
    )

    # --- glue: segment-mean of coord (segment_csr reduce='mean') ---
    coord_np = np.asarray(coord, dtype=np.float64)
    coord_sum = np.zeros((num_clusters, coord_np.shape[1]), dtype=np.float64)
    np.add.at(coord_sum, inverse, coord_np)
    pooled_coord = (coord_sum / counts[:, None]).astype(np.float32)

    return dict(
        feat=pooled_feat,
        coord=jnp.asarray(pooled_coord),
        grid_coord=jnp.asarray(uniq[:, 1:], dtype=jnp.int32),
        batch=jnp.asarray(uniq[:, 0], dtype=jnp.int32),
        pooling_inverse=jnp.asarray(inverse, dtype=jnp.int32),
    )


if __name__ == "__main__":
    key = jax.random.PRNGKey(0)
    N, C_in, C_out, stride = 1024, 32, 64, 2
    k1, k2, k3, k4, k5 = jax.random.split(key, 5)

    # Deterministic synthetic point cloud (2 batches of 512 points each); large
    # enough that several cluster blocks / point tiles are exercised.
    grid_coord = jax.random.randint(k1, (N, 3), 0, 16, dtype=jnp.int32)
    coord = jax.random.uniform(k2, (N, 3), dtype=jnp.float32)
    feat = jax.random.normal(k3, (N, C_in), dtype=jnp.float32)
    batch = jnp.concatenate(
        [jnp.zeros(N // 2, dtype=jnp.int32), jnp.ones(N - N // 2, dtype=jnp.int32)]
    )

    # Deterministic nn.Linear(in_channels, out_channels) parameters.
    weight = jax.random.normal(k4, (C_out, C_in), dtype=jnp.float32) * 0.1
    bias = jax.random.normal(k5, (C_out,), dtype=jnp.float32) * 0.1

    out = grid_pooling_forward(feat, coord, grid_coord, batch, weight, bias,
                               stride=stride)
    jax.block_until_ready(out["feat"])

    # Reference for the Pallas hot path (bf16 matmul operands, f32 max + bias).
    feat_bf = np.asarray(jnp.asarray(feat, dtype=jnp.bfloat16).astype(jnp.float32))
    w_bf = np.asarray(jnp.asarray(weight, dtype=jnp.bfloat16).astype(jnp.float32))
    proj_ref = feat_bf @ w_bf.T + np.asarray(bias)
    inv = np.asarray(out["pooling_inverse"])
    M = int(inv.max()) + 1
    ref = np.full((M, C_out), -np.inf, dtype=np.float32)
    np.maximum.at(ref, inv, proj_ref.astype(np.float32))

    got = np.asarray(out["feat"])
    assert got.shape == (M, C_out), got.shape
    assert np.all(np.isfinite(got)), "non-finite pooled features"
    assert np.allclose(got, ref, atol=1e-2, rtol=1e-2), (
        "pooled feature mismatch: max abs err %e" % float(np.max(np.abs(got - ref)))
    )
    print("KERNEL_OK")
</pallas_src>

<mosaic_0001>
module attributes {stable_mosaic.version = 11 : i64} {
  func.func @_grid_pool_kernel(%arg0: i32, %arg1: i32, %arg2: i32, %arg3: memref<6xi32, #tpu.memory_space<smem>>, %arg4: memref<6xi32, #tpu.memory_space<smem>>, %arg5: memref<44xi32, #tpu.memory_space<smem>>, %arg6: memref<44xi32, #tpu.memory_space<smem>>, %arg7: memref<128x128xbf16, #tpu.memory_space<vmem>>, %arg8: memref<128x1xi32, #tpu.memory_space<vmem>>, %arg9: memref<128x128xbf16, #tpu.memory_space<vmem>>, %arg10: memref<1x128xf32, #tpu.memory_space<vmem>>, %arg11: memref<128x128xf32, #tpu.memory_space<vmem>>) attributes {dimension_semantics = [#tpu.dimension_semantics<parallel>, #tpu.dimension_semantics<parallel>, #tpu.dimension_semantics<arbitrary>], iteration_bounds = array<i64: 6, 1, 2>, scalar_prefetch = 4 : i64, scratch_operands = 0 : i64, tpu.core_type = #tpu.core_type<tc>, window_params = [{transform_indices = @transform_0, window_bounds = array<i64: 128, 128>}, {transform_indices = @transform_1, window_bounds = array<i64: 128, 1>}, {transform_indices = @transform_2, window_bounds = array<i64: 128, 128>}, {transform_indices = @transform_3, window_bounds = array<i64: 1, 128>}, {transform_indices = @transform_4, window_bounds = array<i64: 128, 128>}]} {
    %0 = arith.index_cast %arg0 : i32 to index
    %1 = memref.load %arg4[%0] : memref<6xi32, #tpu.memory_space<smem>>
    %c0_i32 = arith.constant 0 : i32
    %2 = arith.cmpi eq, %arg2, %c0_i32 : i32
    %3 = arith.extui %2 : i1 to i32
    %c0_i32_0 = arith.constant 0 : i32
    %4 = arith.cmpi ne, %3, %c0_i32_0 : i32
    scf.if %4 {
      %cst = arith.constant -3.40282347E+38 : f32
      %12 = vector.broadcast %cst : f32 to vector<128x128xf32>
      %c0 = arith.constant 0 : index
      %c0_3 = arith.constant 0 : index
      %13 = vector.load %arg11[%c0, %c0_3] : memref<128x128xf32, #tpu.memory_space<vmem>>, vector<128x128xf32>
      tpu.vector_store %arg11[%c0, %c0_3], %12 {strides = array<i32>} : memref<128x128xf32, #tpu.memory_space<vmem>>, vector<128x128xf32>,
    } else {
    }
    %5 = arith.cmpi slt, %arg2, %1 : i32
    %6 = arith.extui %5 : i1 to i32
    %c0_i32_1 = arith.constant 0 : i32
    %7 = arith.cmpi ne, %6, %c0_i32_1 : i32
    scf.if %7 {
      %c0 = arith.constant 0 : index
      %c0_3 = arith.constant 0 : index
      %12 = vector.load %arg7[%c0, %c0_3] : memref<128x128xbf16, #tpu.memory_space<vmem>>, vector<128x128xbf16>
      %c0_4 = arith.constant 0 : index
      %c0_5 = arith.constant 0 : index
      %13 = vector.load %arg9[%c0_4, %c0_5] : memref<128x128xbf16, #tpu.memory_space<vmem>>, vector<128x128xbf16>
      %cst = arith.constant dense<0.000000e+00> : vector<128x128xf32>
      %14 = tpu.matmul %12, %13, %cst {dimension_numbers = #tpu.dot_dimension_numbers<[1], [0], [0], [1], [0, 0, 1, 1], [], []>} : vector<128x128xbf16>, vector<128x128xbf16>, vector<128x128xf32> -> vector<128x128xf32>
      %c0_6 = arith.constant 0 : index
      %c0_7 = arith.constant 0 : index
      %15 = vector.load %arg8[%c0_6, %c0_7] : memref<128x1xi32, #tpu.memory_space<vmem>>, vector<128x1xi32>
      %16 = arith.index_cast %arg0 : i32 to index
      %17 = memref.load %arg3[%16] : memref<6xi32, #tpu.memory_space<smem>>
      %18 = arith.addi %17, %arg2 : i32
      %19 = vector.extract_strided_slice %14 {offsets = [0, 0], sizes = [32, 128], strides = [1, 1]} : vector<128x128xf32> to vector<32x128xf32>
      %20 = vector.extract_strided_slice %15 {offsets = [0, 0], sizes = [32, 1], strides = [1, 1]} : vector<128x1xi32> to vector<32x1xi32>
      %c4_i32 = arith.constant 4 : i32
      %21 = arith.muli %18, %c4_i32 : i32
      %c0_i32_8 = arith.constant 0 : i32
      %22 = arith.addi %21, %c0_i32_8 : i32
      %23 = arith.index_cast %22 : i32 to index
      %24 = memref.load %arg5[%23] : memref<44xi32, #tpu.memory_space<smem>>
      %25 = arith.index_cast %22 : i32 to index
      %26 = memref.load %arg6[%25] : memref<44xi32, #tpu.memory_space<smem>>
      %c0_i32_9 = arith.constant 0 : i32
      %c0_i32_10 = arith.constant 0 : i32
      %27 = arith.subi %26, %c0_i32_10 : i32
      %28 = arith.addi %c0_i32_10, %27 : i32
      %c1_i32_11 = arith.constant 1 : i32
      scf.for %arg12 = %c0_i32_10 to %28 step %c1_i32_11  : i32 {
        %59 = arith.addi %24, %arg12 : i32
        %c8_i32 = arith.constant 8 : i32
        %60 = arith.muli %59, %c8_i32 : i32
        %61 = tpu.assume_multiple %60, 8 : i32
        %c0_i32_25 = arith.constant 0 : i32
        %62 = arith.addi %61, %c0_i32_25 : i32
        %63 = vector.broadcast %62 : i32 to vector<32x1xi32>
        %64 = arith.cmpi eq, %20, %63 : vector<32x1xi32>
        %cst_26 = arith.constant -3.40282347E+38 : f32
        %65 = vector.shape_cast %64 : vector<32x1xi1> to vector<32x1xi1>
        %66 = vector.broadcast %65 : vector<32x1xi1> to vector<32x128xi1>
        %67 = vector.broadcast %cst_26 : f32 to vector<32x128xf32>
        %68 = arith.select %66, %19, %67 : vector<32x128xi1>, vector<32x128xf32>
        %cst_27 = arith.constant dense<0xFF800000> : vector<128xf32>
        %69 = vector.multi_reduction <maximumf>, %68, %cst_27 [0] : vector<32x128xf32> to vector<128xf32>
        %70 = vector.shape_cast %69 : vector<128xf32> to vector<1x128xf32>
        %c1_i32_28 = arith.constant 1 : i32
        %71 = arith.addi %61, %c1_i32_28 : i32
        %72 = vector.broadcast %71 : i32 to vector<32x1xi32>
        %73 = arith.cmpi eq, %20, %72 : vector<32x1xi32>
        %cst_29 = arith.constant -3.40282347E+38 : f32
        %74 = vector.shape_cast %73 : vector<32x1xi1> to vector<32x1xi1>
        %75 = vector.broadcast %74 : vector<32x1xi1> to vector<32x128xi1>
        %76 = vector.broadcast %cst_29 : f32 to vector<32x128xf32>
        %77 = arith.select %75, %19, %76 : vector<32x128xi1>, vector<32x128xf32>
        %cst_30 = arith.constant dense<0xFF800000> : vector<128xf32>
        %78 = vector.multi_reduction <maximumf>, %77, %cst_30 [0] : vector<32x128xf32> to vector<128xf32>
        %79 = vector.shape_cast %78 : vector<128xf32> to vector<1x128xf32>
        %c2_i32_31 = arith.constant 2 : i32
        %80 = arith.addi %61, %c2_i32_31 : i32
        %81 = vector.broadcast %80 : i32 to vector<32x1xi32>
        %82 = arith.cmpi eq, %20, %81 : vector<32x1xi32>
        %cst_32 = arith.constant -3.40282347E+38 : f32
        %83 = vector.shape_cast %82 : vector<32x1xi1> to vector<32x1xi1>
        %84 = vector.broadcast %83 : vector<32x1xi1> to vector<32x128xi1>
        %85 = vector.broadcast %cst_32 : f32 to vector<32x128xf32>
        %86 = arith.select %84, %19, %85 : vector<32x128xi1>, vector<32x128xf32>
        %cst_33 = arith.constant dense<0xFF800000> : vector<128xf32>
        %87 = vector.multi_reduction <maximumf>, %86, %cst_33 [0] : vector<32x128xf32> to vector<128xf32>
        %88 = vector.shape_cast %87 : vector<128xf32> to vector<1x128xf32>
        %c3_i32_34 = arith.constant 3 : i32
        %89 = arith.addi %61, %c3_i32_34 : i32
        %90 = vector.broadcast %89 : i32 to vector<32x1xi32>
        %91 = arith.cmpi eq, %20, %90 : vector<32x1xi32>
        %cst_35 = arith.constant -3.40282347E+38 : f32
        %92 = vector.shape_cast %91 : vector<32x1xi1> to vector<32x1xi1>
        %93 = vector.broadcast %92 : vector<32x1xi1> to vector<32x128xi1>
        %94 = vector.broadcast %cst_35 : f32 to vector<32x128xf32>
        %95 = arith.select %93, %19, %94 : vector<32x128xi1>, vector<32x128xf32>
        %cst_36 = arith.constant dense<0xFF800000> : vector<128xf32>
        %96 = vector.multi_reduction <maximumf>, %95, %cst_36 [0] : vector<32x128xf32> to vector<128xf32>
        %97 = vector.shape_cast %96 : vector<128xf32> to vector<1x128xf32>
        %c4_i32_37 = arith.constant 4 : i32
        %98 = arith.addi %61, %c4_i32_37 : i32
        %99 = vector.broadcast %98 : i32 to vector<32x1xi32>
        %100 = arith.cmpi eq, %20, %99 : vector<32x1xi32>
        %cst_38 = arith.constant -3.40282347E+38 : f32
        %101 = vector.shape_cast %100 : vector<32x1xi1> to vector<32x1xi1>
        %102 = vector.broadcast %101 : vector<32x1xi1> to vector<32x128xi1>
        %103 = vector.broadcast %cst_38 : f32 to vector<32x128xf32>
        %104 = arith.select %102, %19, %103 : vector<32x128xi1>, vector<32x128xf32>
        %cst_39 = arith.constant dense<0xFF800000> : vector<128xf32>
        %105 = vector.multi_reduction <maximumf>, %104, %cst_39 [0] : vector<32x128xf32> to vector<128xf32>
        %106 = vector.shape_cast %105 : vector<128xf32> to vector<1x128xf32>
        %c5_i32 = arith.constant 5 : i32
        %107 = arith.addi %61, %c5_i32 : i32
        %108 = vector.broadcast %107 : i32 to vector<32x1xi32>
        %109 = arith.cmpi eq, %20, %108 : vector<32x1xi32>
        %cst_40 = arith.constant -3.40282347E+38 : f32
        %110 = vector.shape_cast %109 : vector<32x1xi1> to vector<32x1xi1>
        %111 = vector.broadcast %110 : vector<32x1xi1> to vector<32x128xi1>
        %112 = vector.broadcast %cst_40 : f32 to vector<32x128xf32>
        %113 = arith.select %111, %19, %112 : vector<32x128xi1>, vector<32x128xf32>
        %cst_41 = arith.constant dense<0xFF800000> : vector<128xf32>
        %114 = vector.multi_reduction <maximumf>, %113, %cst_41 [0] : vector<32x128xf32> to vector<128xf32>
        %115 = vector.shape_cast %114 : vector<128xf32> to vector<1x128xf32>
        %c6_i32 = arith.constant 6 : i32
        %116 = arith.addi %61, %c6_i32 : i32
        %117 = vector.broadcast %116 : i32 to vector<32x1xi32>
        %118 = arith.cmpi eq, %20, %117 : vector<32x1xi32>
        %cst_42 = arith.constant -3.40282347E+38 : f32
        %119 = vector.shape_cast %118 : vector<32x1xi1> to vector<32x1xi1>
        %120 = vector.broadcast %119 : vector<32x1xi1> to vector<32x128xi1>
        %121 = vector.broadcast %cst_42 : f32 to vector<32x128xf32>
        %122 = arith.select %120, %19, %121 : vector<32x128xi1>, vector<32x128xf32>
        %cst_43 = arith.constant dense<0xFF800000> : vector<128xf32>
        %123 = vector.multi_reduction <maximumf>, %122, %cst_43 [0] : vector<32x128xf32> to vector<128xf32>
        %124 = vector.shape_cast %123 : vector<128xf32> to vector<1x128xf32>
        %c7_i32 = arith.constant 7 : i32
        %125 = arith.addi %61, %c7_i32 : i32
        %126 = vector.broadcast %125 : i32 to vector<32x1xi32>
        %127 = arith.cmpi eq, %20, %126 : vector<32x1xi32>
        %cst_44 = arith.constant -3.40282347E+38 : f32
        %128 = vector.shape_cast %127 : vector<32x1xi1> to vector<32x1xi1>
        %129 = vector.broadcast %128 : vector<32x1xi1> to vector<32x128xi1>
        %130 = vector.broadcast %cst_44 : f32 to vector<32x128xf32>
        %131 = arith.select %129, %19, %130 : vector<32x128xi1>, vector<32x128xf32>
        %cst_45 = arith.constant dense<0xFF800000> : vector<128xf32>
        %132 = vector.multi_reduction <maximumf>, %131, %cst_45 [0] : vector<32x128xf32> to vector<128xf32>
        %133 = vector.shape_cast %132 : vector<128xf32> to vector<1x128xf32>
        %134 = tpu.concatenate %70, %79, %88, %97, %106, %115, %124, %133 in 0 : vector<1x128xf32>, vector<1x128xf32>, vector<1x128xf32>, vector<1x128xf32>, vector<1x128xf32>, vector<1x128xf32>, vector<1x128xf32>, vector<1x128xf32> -> vector<8x128xf32>
        %135 = arith.index_cast %61 : i32 to index
        %c0_46 = arith.constant 0 : index
        %136 = vector.load %arg11[%135, %c0_46] : memref<128x128xf32, #tpu.memory_space<vmem>>, vector<8x128xf32>
        %137 = arith.maximumf %136, %134 : vector<8x128xf32>
        %138 = arith.index_cast %61 : i32 to index
        %c0_47 = arith.constant 0 : index
        %139 = vector.load %arg11[%138, %c0_47] : memref<128x128xf32, #tpu.memory_space<vmem>>, vector<8x128xf32>
        tpu.vector_store %arg11[%138, %c0_47], %137 {strides = array<i32>} : memref<128x128xf32, #tpu.memory_space<vmem>>, vector<8x128xf32>,
      }
      %29 = vector.extract_strided_slice %14 {offsets = [32, 0], sizes = [32, 128], strides = [1, 1]} : vector<128x128xf32> to vector<32x128xf32>
      %30 = vector.extract_strided_slice %15 {offsets = [32, 0], sizes = [32, 1], strides = [1, 1]} : vector<128x1xi32> to vector<32x1xi32>
      %c4_i32_12 = arith.constant 4 : i32
      %31 = arith.muli %18, %c4_i32_12 : i32
      %c1_i32_13 = arith.constant 1 : i32
      %32 = arith.addi %31, %c1_i32_13 : i32
      %33 = arith.index_cast %32 : i32 to index
      %34 = memref.load %arg5[%33] : memref<44xi32, #tpu.memory_space<smem>>
      %35 = arith.index_cast %32 : i32 to index
      %36 = memref.load %arg6[%35] : memref<44xi32, #tpu.memory_space<smem>>
      %c0_i32_14 = arith.constant 0 : i32
      %c0_i32_15 = arith.constant 0 : i32
      %37 = arith.subi %36, %c0_i32_15 : i32
      %38 = arith.addi %c0_i32_15, %37 : i32
      %c1_i32_16 = arith.constant 1 : i32
      scf.for %arg12 = %c0_i32_15 to %38 step %c1_i32_16  : i32 {
        %59 = arith.addi %34, %arg12 : i32
        %c8_i32 = arith.constant 8 : i32
        %60 = arith.muli %59, %c8_i32 : i32
        %61 = tpu.assume_multiple %60, 8 : i32
        %c0_i32_25 = arith.constant 0 : i32
        %62 = arith.addi %61, %c0_i32_25 : i32
        %63 = vector.broadcast %62 : i32 to vector<32x1xi32>
        %64 = arith.cmpi eq, %30, %63 : vector<32x1xi32>
        %cst_26 = arith.constant -3.40282347E+38 : f32
        %65 = vector.shape_cast %64 : vector<32x1xi1> to vector<32x1xi1>
        %66 = vector.broadcast %65 : vector<32x1xi1> to vector<32x128xi1>
        %67 = vector.broadcast %cst_26 : f32 to vector<32x128xf32>
        %68 = arith.select %66, %29, %67 : vector<32x128xi1>, vector<32x128xf32>
        %cst_27 = arith.constant dense<0xFF800000> : vector<128xf32>
        %69 = vector.multi_reduction <maximumf>, %68, %cst_27 [0] : vector<32x128xf32> to vector<128xf32>
        %70 = vector.shape_cast %69 : vector<128xf32> to vector<1x128xf32>
        %c1_i32_28 = arith.constant 1 : i32
        %71 = arith.addi %61, %c1_i32_28 : i32
        %72 = vector.broadcast %71 : i32 to vector<32x1xi32>
        %73 = arith.cmpi eq, %30, %72 : vector<32x1xi32>
        %cst_29 = arith.constant -3.40282347E+38 : f32
        %74 = vector.shape_cast %73 : vector<32x1xi1> to vector<32x1xi1>
        %75 = vector.broadcast %74 : vector<32x1xi1> to vector<32x128xi1>
        %76 = vector.broadcast %cst_29 : f32 to vector<32x128xf32>
        %77 = arith.select %75, %29, %76 : vector<32x128xi1>, vector<32x128xf32>
        %cst_30 = arith.constant dense<0xFF800000> : vector<128xf32>
        %78 = vector.multi_reduction <maximumf>, %77, %cst_30 [0] : vector<32x128xf32> to vector<128xf32>
        %79 = vector.shape_cast %78 : vector<128xf32> to vector<1x128xf32>
        %c2_i32_31 = arith.constant 2 : i32
        %80 = arith.addi %61, %c2_i32_31 : i32
        %81 = vector.broadcast %80 : i32 to vector<32x1xi32>
        %82 = arith.cmpi eq, %30, %81 : vector<32x1xi32>
        %cst_32 = arith.constant -3.40282347E+38 : f32
        %83 = vector.shape_cast %82 : vector<32x1xi1> to vector<32x1xi1>
        %84 = vector.broadcast %83 : vector<32x1xi1> to vector<32x128xi1>
        %85 = vector.broadcast %cst_32 : f32 to vector<32x128xf32>
        %86 = arith.select %84, %29, %85 : vector<32x128xi1>, vector<32x128xf32>
        %cst_33 = arith.constant dense<0xFF800000> : vector<128xf32>
        %87 = vector.multi_reduction <maximumf>, %86, %cst_33 [0] : vector<32x128xf32> to vector<128xf32>
        %88 = vector.shape_cast %87 : vector<128xf32> to vector<1x128xf32>
        %c3_i32_34 = arith.constant 3 : i32
        %89 = arith.addi %61, %c3_i32_34 : i32
        %90 = vector.broadcast %89 : i32 to vector<32x1xi32>
        %91 = arith.cmpi eq, %30, %90 : vector<32x1xi32>
        %cst_35 = arith.constant -3.40282347E+38 : f32
        %92 = vector.shape_cast %91 : vector<32x1xi1> to vector<32x1xi1>
        %93 = vector.broadcast %92 : vector<32x1xi1> to vector<32x128xi1>
        %94 = vector.broadcast %cst_35 : f32 to vector<32x128xf32>
        %95 = arith.select %93, %29, %94 : vector<32x128xi1>, vector<32x128xf32>
        %cst_36 = arith.constant dense<0xFF800000> : vector<128xf32>
        %96 = vector.multi_reduction <maximumf>, %95, %cst_36 [0] : vector<32x128xf32> to vector<128xf32>
        %97 = vector.shape_cast %96 : vector<128xf32> to vector<1x128xf32>
        %c4_i32_37 = arith.constant 4 : i32
        %98 = arith.addi %61, %c4_i32_37 : i32
        %99 = vector.broadcast %98 : i32 to vector<32x1xi32>
        %100 = arith.cmpi eq, %30, %99 : vector<32x1xi32>
        %cst_38 = arith.constant -3.40282347E+38 : f32
        %101 = vector.shape_cast %100 : vector<32x1xi1> to vector<32x1xi1>
        %102 = vector.broadcast %101 : vector<32x1xi1> to vector<32x128xi1>
        %103 = vector.broadcast %cst_38 : f32 to vector<32x128xf32>
        %104 = arith.select %102, %29, %103 : vector<32x128xi1>, vector<32x128xf32>
        %cst_39 = arith.constant dense<0xFF800000> : vector<128xf32>
        %105 = vector.multi_reduction <maximumf>, %104, %cst_39 [0] : vector<32x128xf32> to vector<128xf32>
        %106 = vector.shape_cast %105 : vector<128xf32> to vector<1x128xf32>
        %c5_i32 = arith.constant 5 : i32
        %107 = arith.addi %61, %c5_i32 : i32
        %108 = vector.broadcast %107 : i32 to vector<32x1xi32>
        %109 = arith.cmpi eq, %30, %108 : vector<32x1xi32>
        %cst_40 = arith.constant -3.40282347E+38 : f32
        %110 = vector.shape_cast %109 : vector<32x1xi1> to vector<32x1xi1>
        %111 = vector.broadcast %110 : vector<32x1xi1> to vector<32x128xi1>
        %112 = vector.broadcast %cst_40 : f32 to vector<32x128xf32>
        %113 = arith.select %111, %29, %112 : vector<32x128xi1>, vector<32x128xf32>
        %cst_41 = arith.constant dense<0xFF800000> : vector<128xf32>
        %114 = vector.multi_reduction <maximumf>, %113, %cst_41 [0] : vector<32x128xf32> to vector<128xf32>
        %115 = vector.shape_cast %114 : vector<128xf32> to vector<1x128xf32>
        %c6_i32 = arith.constant 6 : i32
        %116 = arith.addi %61, %c6_i32 : i32
        %117 = vector.broadcast %116 : i32 to vector<32x1xi32>
        %118 = arith.cmpi eq, %30, %117 : vector<32x1xi32>
        %cst_42 = arith.constant -3.40282347E+38 : f32
        %119 = vector.shape_cast %118 : vector<32x1xi1> to vector<32x1xi1>
        %120 = vector.broadcast %119 : vector<32x1xi1> to vector<32x128xi1>
        %121 = vector.broadcast %cst_42 : f32 to vector<32x128xf32>
        %122 = arith.select %120, %29, %121 : vector<32x128xi1>, vector<32x128xf32>
        %cst_43 = arith.constant dense<0xFF800000> : vector<128xf32>
        %123 = vector.multi_reduction <maximumf>, %122, %cst_43 [0] : vector<32x128xf32> to vector<128xf32>
        %124 = vector.shape_cast %123 : vector<128xf32> to vector<1x128xf32>
        %c7_i32 = arith.constant 7 : i32
        %125 = arith.addi %61, %c7_i32 : i32
        %126 = vector.broadcast %125 : i32 to vector<32x1xi32>
        %127 = arith.cmpi eq, %30, %126 : vector<32x1xi32>
        %cst_44 = arith.constant -3.40282347E+38 : f32
        %128 = vector.shape_cast %127 : vector<32x1xi1> to vector<32x1xi1>
        %129 = vector.broadcast %128 : vector<32x1xi1> to vector<32x128xi1>
        %130 = vector.broadcast %cst_44 : f32 to vector<32x128xf32>
        %131 = arith.select %129, %29, %130 : vector<32x128xi1>, vector<32x128xf32>
        %cst_45 = arith.constant dense<0xFF800000> : vector<128xf32>
        %132 = vector.multi_reduction <maximumf>, %131, %cst_45 [0] : vector<32x128xf32> to vector<128xf32>
        %133 = vector.shape_cast %132 : vector<128xf32> to vector<1x128xf32>
        %134 = tpu.concatenate %70, %79, %88, %97, %106, %115, %124, %133 in 0 : vector<1x128xf32>, vector<1x128xf32>, vector<1x128xf32>, vector<1x128xf32>, vector<1x128xf32>, vector<1x128xf32>, vector<1x128xf32>, vector<1x128xf32> -> vector<8x128xf32>
        %135 = arith.index_cast %61 : i32 to index
        %c0_46 = arith.constant 0 : index
        %136 = vector.load %arg11[%135, %c0_46] : memref<128x128xf32, #tpu.memory_space<vmem>>, vector<8x128xf32>
        %137 = arith.maximumf %136, %134 : vector<8x128xf32>
        %138 = arith.index_cast %61 : i32 to index
        %c0_47 = arith.constant 0 : index
        %139 = vector.load %arg11[%138, %c0_47] : memref<128x128xf32, #tpu.memory_space<vmem>>, vector<8x128xf32>
        tpu.vector_store %arg11[%138, %c0_47], %137 {strides = array<i32>} : memref<128x128xf32, #tpu.memory_space<vmem>>, vector<8x128xf32>,
      }
      %39 = vector.extract_strided_slice %14 {offsets = [64, 0], sizes = [32, 128], strides = [1, 1]} : vector<128x128xf32> to vector<32x128xf32>
      %40 = vector.extract_strided_slice %15 {offsets = [64, 0], sizes = [32, 1], strides = [1, 1]} : vector<128x1xi32> to vector<32x1xi32>
      %c4_i32_17 = arith.constant 4 : i32
      %41 = arith.muli %18, %c4_i32_17 : i32
      %c2_i32 = arith.constant 2 : i32
      %42 = arith.addi %41, %c2_i32 : i32
      %43 = arith.index_cast %42 : i32 to index
      %44 = memref.load %arg5[%43] : memref<44xi32, #tpu.memory_space<smem>>
      %45 = arith.index_cast %42 : i32 to index
      %46 = memref.load %arg6[%45] : memref<44xi32, #tpu.memory_space<smem>>
      %c0_i32_18 = arith.constant 0 : i32
      %c0_i32_19 = arith.constant 0 : i32
      %47 = arith.subi %46, %c0_i32_19 : i32
      %48 = arith.addi %c0_i32_19, %47 : i32
      %c1_i32_20 = arith.constant 1 : i32
      scf.for %arg12 = %c0_i32_19 to %48 step %c1_i32_20  : i32 {
        %59 = arith.addi %44, %arg12 : i32
        %c8_i32 = arith.constant 8 : i32
        %60 = arith.muli %59, %c8_i32 : i32
        %61 = tpu.assume_multiple %60, 8 : i32
        %c0_i32_25 = arith.constant 0 : i32
        %62 = arith.addi %61, %c0_i32_25 : i32
        %63 = vector.broadcast %62 : i32 to vector<32x1xi32>
        %64 = arith.cmpi eq, %40, %63 : vector<32x1xi32>
        %cst_26 = arith.constant -3.40282347E+38 : f32
        %65 = vector.shape_cast %64 : vector<32x1xi1> to vector<32x1xi1>
        %66 = vector.broadcast %65 : vector<32x1xi1> to vector<32x128xi1>
        %67 = vector.broadcast %cst_26 : f32 to vector<32x128xf32>
        %68 = arith.select %66, %39, %67 : vector<32x128xi1>, vector<32x128xf32>
        %cst_27 = arith.constant dense<0xFF800000> : vector<128xf32>
        %69 = vector.multi_reduction <maximumf>, %68, %cst_27 [0] : vector<32x128xf32> to vector<128xf32>
        %70 = vector.shape_cast %69 : vector<128xf32> to vector<1x128xf32>
        %c1_i32_28 = arith.constant 1 : i32
        %71 = arith.addi %61, %c1_i32_28 : i32
        %72 = vector.broadcast %71 : i32 to vector<32x1xi32>
        %73 = arith.cmpi eq, %40, %72 : vector<32x1xi32>
        %cst_29 = arith.constant -3.40282347E+38 : f32
        %74 = vector.shape_cast %73 : vector<32x1xi1> to vector<32x1xi1>
        %75 = vector.broadcast %74 : vector<32x1xi1> to vector<32x128xi1>
        %76 = vector.broadcast %cst_29 : f32 to vector<32x128xf32>
        %77 = arith.select %75, %39, %76 : vector<32x128xi1>, vector<32x128xf32>
        %cst_30 = arith.constant dense<0xFF800000> : vector<128xf32>
        %78 = vector.multi_reduction <maximumf>, %77, %cst_30 [0] : vector<32x128xf32> to vector<128xf32>
        %79 = vector.shape_cast %78 : vector<128xf32> to vector<1x128xf32>
        %c2_i32_31 = arith.constant 2 : i32
        %80 = arith.addi %61, %c2_i32_31 : i32
        %81 = vector.broadcast %80 : i32 to vector<32x1xi32>
        %82 = arith.cmpi eq, %40, %81 : vector<32x1xi32>
        %cst_32 = arith.constant -3.40282347E+38 : f32
        %83 = vector.shape_cast %82 : vector<32x1xi1> to vector<32x1xi1>
        %84 = vector.broadcast %83 : vector<32x1xi1> to vector<32x128xi1>
        %85 = vector.broadcast %cst_32 : f32 to vector<32x128xf32>
        %86 = arith.select %84, %39, %85 : vector<32x128xi1>, vector<32x128xf32>
        %cst_33 = arith.constant dense<0xFF800000> : vector<128xf32>
        %87 = vector.multi_reduction <maximumf>, %86, %cst_33 [0] : vector<32x128xf32> to vector<128xf32>
        %88 = vector.shape_cast %87 : vector<128xf32> to vector<1x128xf32>
        %c3_i32_34 = arith.constant 3 : i32
        %89 = arith.addi %61, %c3_i32_34 : i32
        %90 = vector.broadcast %89 : i32 to vector<32x1xi32>
        %91 = arith.cmpi eq, %40, %90 : vector<32x1xi32>
        %cst_35 = arith.constant -3.40282347E+38 : f32
        %92 = vector.shape_cast %91 : vector<32x1xi1> to vector<32x1xi1>
        %93 = vector.broadcast %92 : vector<32x1xi1> to vector<32x128xi1>
        %94 = vector.broadcast %cst_35 : f32 to vector<32x128xf32>
        %95 = arith.select %93, %39, %94 : vector<32x128xi1>, vector<32x128xf32>
        %cst_36 = arith.constant dense<0xFF800000> : vector<128xf32>
        %96 = vector.multi_reduction <maximumf>, %95, %cst_36 [0] : vector<32x128xf32> to vector<128xf32>
        %97 = vector.shape_cast %96 : vector<128xf32> to vector<1x128xf32>
        %c4_i32_37 = arith.constant 4 : i32
        %98 = arith.addi %61, %c4_i32_37 : i32
        %99 = vector.broadcast %98 : i32 to vector<32x1xi32>
        %100 = arith.cmpi eq, %40, %99 : vector<32x1xi32>
        %cst_38 = arith.constant -3.40282347E+38 : f32
        %101 = vector.shape_cast %100 : vector<32x1xi1> to vector<32x1xi1>
        %102 = vector.broadcast %101 : vector<32x1xi1> to vector<32x128xi1>
        %103 = vector.broadcast %cst_38 : f32 to vector<32x128xf32>
        %104 = arith.select %102, %39, %103 : vector<32x128xi1>, vector<32x128xf32>
        %cst_39 = arith.constant dense<0xFF800000> : vector<128xf32>
        %105 = vector.multi_reduction <maximumf>, %104, %cst_39 [0] : vector<32x128xf32> to vector<128xf32>
        %106 = vector.shape_cast %105 : vector<128xf32> to vector<1x128xf32>
        %c5_i32 = arith.constant 5 : i32
        %107 = arith.addi %61, %c5_i32 : i32
        %108 = vector.broadcast %107 : i32 to vector<32x1xi32>
        %109 = arith.cmpi eq, %40, %108 : vector<32x1xi32>
        %cst_40 = arith.constant -3.40282347E+38 : f32
        %110 = vector.shape_cast %109 : vector<32x1xi1> to vector<32x1xi1>
        %111 = vector.broadcast %110 : vector<32x1xi1> to vector<32x128xi1>
        %112 = vector.broadcast %cst_40 : f32 to vector<32x128xf32>
        %113 = arith.select %111, %39, %112 : vector<32x128xi1>, vector<32x128xf32>
        %cst_41 = arith.constant dense<0xFF800000> : vector<128xf32>
        %114 = vector.multi_reduction <maximumf>, %113, %cst_41 [0] : vector<32x128xf32> to vector<128xf32>
        %115 = vector.shape_cast %114 : vector<128xf32> to vector<1x128xf32>
        %c6_i32 = arith.constant 6 : i32
        %116 = arith.addi %61, %c6_i32 : i32
        %117 = vector.broadcast %116 : i32 to vector<32x1xi32>
        %118 = arith.cmpi eq, %40, %117 : vector<32x1xi32>
        %cst_42 = arith.constant -3.40282347E+38 : f32
        %119 = vector.shape_cast %118 : vector<32x1xi1> to vector<32x1xi1>
        %120 = vector.broadcast %119 : vector<32x1xi1> to vector<32x128xi1>
        %121 = vector.broadcast %cst_42 : f32 to vector<32x128xf32>
        %122 = arith.select %120, %39, %121 : vector<32x128xi1>, vector<32x128xf32>
        %cst_43 = arith.constant dense<0xFF800000> : vector<128xf32>
        %123 = vector.multi_reduction <maximumf>, %122, %cst_43 [0] : vector<32x128xf32> to vector<128xf32>
        %124 = vector.shape_cast %123 : vector<128xf32> to vector<1x128xf32>
        %c7_i32 = arith.constant 7 : i32
        %125 = arith.addi %61, %c7_i32 : i32
        %126 = vector.broadcast %125 : i32 to vector<32x1xi32>
        %127 = arith.cmpi eq, %40, %126 : vector<32x1xi32>
        %cst_44 = arith.constant -3.40282347E+38 : f32
        %128 = vector.shape_cast %127 : vector<32x1xi1> to vector<32x1xi1>
        %129 = vector.broadcast %128 : vector<32x1xi1> to vector<32x128xi1>
        %130 = vector.broadcast %cst_44 : f32 to vector<32x128xf32>
        %131 = arith.select %129, %39, %130 : vector<32x128xi1>, vector<32x128xf32>
        %cst_45 = arith.constant dense<0xFF800000> : vector<128xf32>
        %132 = vector.multi_reduction <maximumf>, %131, %cst_45 [0] : vector<32x128xf32> to vector<128xf32>
        %133 = vector.shape_cast %132 : vector<128xf32> to vector<1x128xf32>
        %134 = tpu.concatenate %70, %79, %88, %97, %106, %115, %124, %133 in 0 : vector<1x128xf32>, vector<1x128xf32>, vector<1x128xf32>, vector<1x128xf32>, vector<1x128xf32>, vector<1x128xf32>, vector<1x128xf32>, vector<1x128xf32> -> vector<8x128xf32>
        %135 = arith.index_cast %61 : i32 to index
        %c0_46 = arith.constant 0 : index
        %136 = vector.load %arg11[%135, %c0_46] : memref<128x128xf32, #tpu.memory_space<vmem>>, vector<8x128xf32>
        %137 = arith.maximumf %136, %134 : vector<8x128xf32>
        %138 = arith.index_cast %61 : i32 to index
        %c0_47 = arith.constant 0 : index
        %139 = vector.load %arg11[%138, %c0_47] : memref<128x128xf32, #tpu.memory_space<vmem>>, vector<8x128xf32>
        tpu.vector_store %arg11[%138, %c0_47], %137 {strides = array<i32>} : memref<128x128xf32, #tpu.memory_space<vmem>>, vector<8x128xf32>,
      }
      %49 = vector.extract_strided_slice %14 {offsets = [96, 0], sizes = [32, 128], strides = [1, 1]} : vector<128x128xf32> to vector<32x128xf32>
      %50 = vector.extract_strided_slice %15 {offsets = [96, 0], sizes = [32, 1], strides = [1, 1]} : vector<128x1xi32> to vector<32x1xi32>
      %c4_i32_21 = arith.constant 4 : i32
      %51 = arith.muli %18, %c4_i32_21 : i32
      %c3_i32 = arith.constant 3 : i32
      %52 = arith.addi %51, %c3_i32 : i32
      %53 = arith.index_cast %52 : i32 to index
      %54 = memref.load %arg5[%53] : memref<44xi32, #tpu.memory_space<smem>>
      %55 = arith.index_cast %52 : i32 to index
      %56 = memref.load %arg6[%55] : memref<44xi32, #tpu.memory_space<smem>>
      %c0_i32_22 = arith.constant 0 : i32
      %c0_i32_23 = arith.constant 0 : i32
      %57 = arith.subi %56, %c0_i32_23 : i32
      %58 = arith.addi %c0_i32_23, %57 : i32
      %c1_i32_24 = arith.constant 1 : i32
      scf.for %arg12 = %c0_i32_23 to %58 step %c1_i32_24  : i32 {
        %59 = arith.addi %54, %arg12 : i32
        %c8_i32 = arith.constant 8 : i32
        %60 = arith.muli %59, %c8_i32 : i32
        %61 = tpu.assume_multiple %60, 8 : i32
        %c0_i32_25 = arith.constant 0 : i32
        %62 = arith.addi %61, %c0_i32_25 : i32
        %63 = vector.broadcast %62 : i32 to vector<32x1xi32>
        %64 = arith.cmpi eq, %50, %63 : vector<32x1xi32>
        %cst_26 = arith.constant -3.40282347E+38 : f32
        %65 = vector.shape_cast %64 : vector<32x1xi1> to vector<32x1xi1>
        %66 = vector.broadcast %65 : vector<32x1xi1> to vector<32x128xi1>
        %67 = vector.broadcast %cst_26 : f32 to vector<32x128xf32>
        %68 = arith.select %66, %49, %67 : vector<32x128xi1>, vector<32x128xf32>
        %cst_27 = arith.constant dense<0xFF800000> : vector<128xf32>
        %69 = vector.multi_reduction <maximumf>, %68, %cst_27 [0] : vector<32x128xf32> to vector<128xf32>
        %70 = vector.shape_cast %69 : vector<128xf32> to vector<1x128xf32>
        %c1_i32_28 = arith.constant 1 : i32
        %71 = arith.addi %61, %c1_i32_28 : i32
        %72 = vector.broadcast %71 : i32 to vector<32x1xi32>
        %73 = arith.cmpi eq, %50, %72 : vector<32x1xi32>
        %cst_29 = arith.constant -3.40282347E+38 : f32
        %74 = vector.shape_cast %73 : vector<32x1xi1> to vector<32x1xi1>
        %75 = vector.broadcast %74 : vector<32x1xi1> to vector<32x128xi1>
        %76 = vector.broadcast %cst_29 : f32 to vector<32x128xf32>
        %77 = arith.select %75, %49, %76 : vector<32x128xi1>, vector<32x128xf32>
        %cst_30 = arith.constant dense<0xFF800000> : vector<128xf32>
        %78 = vector.multi_reduction <maximumf>, %77, %cst_30 [0] : vector<32x128xf32> to vector<128xf32>
        %79 = vector.shape_cast %78 : vector<128xf32> to vector<1x128xf32>
        %c2_i32_31 = arith.constant 2 : i32
        %80 = arith.addi %61, %c2_i32_31 : i32
        %81 = vector.broadcast %80 : i32 to vector<32x1xi32>
        %82 = arith.cmpi eq, %50, %81 : vector<32x1xi32>
        %cst_32 = arith.constant -3.40282347E+38 : f32
        %83 = vector.shape_cast %82 : vector<32x1xi1> to vector<32x1xi1>
        %84 = vector.broadcast %83 : vector<32x1xi1> to vector<32x128xi1>
        %85 = vector.broadcast %cst_32 : f32 to vector<32x128xf32>
        %86 = arith.select %84, %49, %85 : vector<32x128xi1>, vector<32x128xf32>
        %cst_33 = arith.constant dense<0xFF800000> : vector<128xf32>
        %87 = vector.multi_reduction <maximumf>, %86, %cst_33 [0] : vector<32x128xf32> to vector<128xf32>
        %88 = vector.shape_cast %87 : vector<128xf32> to vector<1x128xf32>
        %c3_i32_34 = arith.constant 3 : i32
        %89 = arith.addi %61, %c3_i32_34 : i32
        %90 = vector.broadcast %89 : i32 to vector<32x1xi32>
        %91 = arith.cmpi eq, %50, %90 : vector<32x1xi32>
        %cst_35 = arith.constant -3.40282347E+38 : f32
        %92 = vector.shape_cast %91 : vector<32x1xi1> to vector<32x1xi1>
        %93 = vector.broadcast %92 : vector<32x1xi1> to vector<32x128xi1>
        %94 = vector.broadcast %cst_35 : f32 to vector<32x128xf32>
        %95 = arith.select %93, %49, %94 : vector<32x128xi1>, vector<32x128xf32>
        %cst_36 = arith.constant dense<0xFF800000> : vector<128xf32>
        %96 = vector.multi_reduction <maximumf>, %95, %cst_36 [0] : vector<32x128xf32> to vector<128xf32>
        %97 = vector.shape_cast %96 : vector<128xf32> to vector<1x128xf32>
        %c4_i32_37 = arith.constant 4 : i32
        %98 = arith.addi %61, %c4_i32_37 : i32
        %99 = vector.broadcast %98 : i32 to vector<32x1xi32>
        %100 = arith.cmpi eq, %50, %99 : vector<32x1xi32>
        %cst_38 = arith.constant -3.40282347E+38 : f32
        %101 = vector.shape_cast %100 : vector<32x1xi1> to vector<32x1xi1>
        %102 = vector.broadcast %101 : vector<32x1xi1> to vector<32x128xi1>
        %103 = vector.broadcast %cst_38 : f32 to vector<32x128xf32>
        %104 = arith.select %102, %49, %103 : vector<32x128xi1>, vector<32x128xf32>
        %cst_39 = arith.constant dense<0xFF800000> : vector<128xf32>
        %105 = vector.multi_reduction <maximumf>, %104, %cst_39 [0] : vector<32x128xf32> to vector<128xf32>
        %106 = vector.shape_cast %105 : vector<128xf32> to vector<1x128xf32>
        %c5_i32 = arith.constant 5 : i32
        %107 = arith.addi %61, %c5_i32 : i32
        %108 = vector.broadcast %107 : i32 to vector<32x1xi32>
        %109 = arith.cmpi eq, %50, %108 : vector<32x1xi32>
        %cst_40 = arith.constant -3.40282347E+38 : f32
        %110 = vector.shape_cast %109 : vector<32x1xi1> to vector<32x1xi1>
        %111 = vector.broadcast %110 : vector<32x1xi1> to vector<32x128xi1>
        %112 = vector.broadcast %cst_40 : f32 to vector<32x128xf32>
        %113 = arith.select %111, %49, %112 : vector<32x128xi1>, vector<32x128xf32>
        %cst_41 = arith.constant dense<0xFF800000> : vector<128xf32>
        %114 = vector.multi_reduction <maximumf>, %113, %cst_41 [0] : vector<32x128xf32> to vector<128xf32>
        %115 = vector.shape_cast %114 : vector<128xf32> to vector<1x128xf32>
        %c6_i32 = arith.constant 6 : i32
        %116 = arith.addi %61, %c6_i32 : i32
        %117 = vector.broadcast %116 : i32 to vector<32x1xi32>
        %118 = arith.cmpi eq, %50, %117 : vector<32x1xi32>
        %cst_42 = arith.constant -3.40282347E+38 : f32
        %119 = vector.shape_cast %118 : vector<32x1xi1> to vector<32x1xi1>
        %120 = vector.broadcast %119 : vector<32x1xi1> to vector<32x128xi1>
        %121 = vector.broadcast %cst_42 : f32 to vector<32x128xf32>
        %122 = arith.select %120, %49, %121 : vector<32x128xi1>, vector<32x128xf32>
        %cst_43 = arith.constant dense<0xFF800000> : vector<128xf32>
        %123 = vector.multi_reduction <maximumf>, %122, %cst_43 [0] : vector<32x128xf32> to vector<128xf32>
        %124 = vector.shape_cast %123 : vector<128xf32> to vector<1x128xf32>
        %c7_i32 = arith.constant 7 : i32
        %125 = arith.addi %61, %c7_i32 : i32
        %126 = vector.broadcast %125 : i32 to vector<32x1xi32>
        %127 = arith.cmpi eq, %50, %126 : vector<32x1xi32>
        %cst_44 = arith.constant -3.40282347E+38 : f32
        %128 = vector.shape_cast %127 : vector<32x1xi1> to vector<32x1xi1>
        %129 = vector.broadcast %128 : vector<32x1xi1> to vector<32x128xi1>
        %130 = vector.broadcast %cst_44 : f32 to vector<32x128xf32>
        %131 = arith.select %129, %49, %130 : vector<32x128xi1>, vector<32x128xf32>
        %cst_45 = arith.constant dense<0xFF800000> : vector<128xf32>
        %132 = vector.multi_reduction <maximumf>, %131, %cst_45 [0] : vector<32x128xf32> to vector<128xf32>
        %133 = vector.shape_cast %132 : vector<128xf32> to vector<1x128xf32>
        %134 = tpu.concatenate %70, %79, %88, %97, %106, %115, %124, %133 in 0 : vector<1x128xf32>, vector<1x128xf32>, vector<1x128xf32>, vector<1x128xf32>, vector<1x128xf32>, vector<1x128xf32>, vector<1x128xf32>, vector<1x128xf32> -> vector<8x128xf32>
        %135 = arith.index_cast %61 : i32 to index
        %c0_46 = arith.constant 0 : index
        %136 = vector.load %arg11[%135, %c0_46] : memref<128x128xf32, #tpu.memory_space<vmem>>, vector<8x128xf32>
        %137 = arith.maximumf %136, %134 : vector<8x128xf32>
        %138 = arith.index_cast %61 : i32 to index
        %c0_47 = arith.constant 0 : index
        %139 = vector.load %arg11[%138, %c0_47] : memref<128x128xf32, #tpu.memory_space<vmem>>, vector<8x128xf32>
        tpu.vector_store %arg11[%138, %c0_47], %137 {strides = array<i32>} : memref<128x128xf32, #tpu.memory_space<vmem>>, vector<8x128xf32>,
      }
    } else {
    }
    %c1_i32 = arith.constant 1 : i32
    %8 = arith.subi %1, %c1_i32 : i32
    %9 = arith.cmpi eq, %arg2, %8 : i32
    %10 = arith.extui %9 : i1 to i32
    %c0_i32_2 = arith.constant 0 : i32
    %11 = arith.cmpi ne, %10, %c0_i32_2 : i32
    scf.if %11 {
      %c0 = arith.constant 0 : index
      %c0_3 = arith.constant 0 : index
      %12 = vector.load %arg11[%c0, %c0_3] : memref<128x128xf32, #tpu.memory_space<vmem>>, vector<128x128xf32>
      %c0_4 = arith.constant 0 : index
      %c0_5 = arith.constant 0 : index
      %13 = vector.load %arg10[%c0_4, %c0_5] : memref<1x128xf32, #tpu.memory_space<vmem>>, vector<1x128xf32>
      %14 = vector.broadcast %13 : vector<1x128xf32> to vector<128x128xf32>
      %15 = arith.addf %12, %14 : vector<128x128xf32>
      %c0_6 = arith.constant 0 : index
      %c0_7 = arith.constant 0 : index
      %16 = vector.load %arg11[%c0_6, %c0_7] : memref<128x128xf32, #tpu.memory_space<vmem>>, vector<128x128xf32>
      tpu.vector_store %arg11[%c0_6, %c0_7], %15 {strides = array<i32>} : memref<128x128xf32, #tpu.memory_space<vmem>>, vector<128x128xf32>,
    } else {
    }
    return
  }
  func.func @transform_0(%arg0: i32, %arg1: i32, %arg2: i32, %arg3: memref<6xi32, #tpu.memory_space<smem>>, %arg4: memref<6xi32, #tpu.memory_space<smem>>, %arg5: memref<44xi32, #tpu.memory_space<smem>>, %arg6: memref<44xi32, #tpu.memory_space<smem>>) -> (i32, i32) {
    %0 = arith.index_cast %arg0 : i32 to index
    %1 = memref.load %arg3[%0] : memref<6xi32, #tpu.memory_space<smem>>
    %2 = arith.index_cast %arg0 : i32 to index
    %3 = memref.load %arg4[%2] : memref<6xi32, #tpu.memory_space<smem>>
    %c1_i32 = arith.constant 1 : i32
    %4 = arith.subi %3, %c1_i32 : i32
    %5 = arith.minsi %arg2, %4 : i32
    %6 = arith.addi %1, %5 : i32
    %c0_i32 = arith.constant 0 : i32
    %c0_i32_0 = arith.constant 0 : i32
    return %6, %c0_i32 : i32, i32
  }
  func.func @transform_1(%arg0: i32, %arg1: i32, %arg2: i32, %arg3: memref<6xi32, #tpu.memory_space<smem>>, %arg4: memref<6xi32, #tpu.memory_space<smem>>, %arg5: memref<44xi32, #tpu.memory_space<smem>>, %arg6: memref<44xi32, #tpu.memory_space<smem>>) -> (i32, i32) {
    %0 = arith.index_cast %arg0 : i32 to index
    %1 = memref.load %arg3[%0] : memref<6xi32, #tpu.memory_space<smem>>
    %2 = arith.index_cast %arg0 : i32 to index
    %3 = memref.load %arg4[%2] : memref<6xi32, #tpu.memory_space<smem>>
    %c1_i32 = arith.constant 1 : i32
    %4 = arith.subi %3, %c1_i32 : i32
    %5 = arith.minsi %arg2, %4 : i32
    %6 = arith.addi %1, %5 : i32
    %c0_i32 = arith.constant 0 : i32
    %c0_i32_0 = arith.constant 0 : i32
    return %6, %c0_i32 : i32, i32
  }
  func.func @transform_2(%arg0: i32, %arg1: i32, %arg2: i32, %arg3: memref<6xi32, #tpu.memory_space<smem>>, %arg4: memref<6xi32, #tpu.memory_space<smem>>, %arg5: memref<44xi32, #tpu.memory_space<smem>>, %arg6: memref<44xi32, #tpu.memory_space<smem>>) -> (i32, i32) {
    %c0_i32 = arith.constant 0 : i32
    %c0_i32_0 = arith.constant 0 : i32
    return %c0_i32, %arg1 : i32, i32
  }
  func.func @transform_3(%arg0: i32, %arg1: i32, %arg2: i32, %arg3: memref<6xi32, #tpu.memory_space<smem>>, %arg4: memref<6xi32, #tpu.memory_space<smem>>, %arg5: memref<44xi32, #tpu.memory_space<smem>>, %arg6: memref<44xi32, #tpu.memory_space<smem>>) -> (i32, i32) {
    %c0_i32 = arith.constant 0 : i32
    %c0_i32_0 = arith.constant 0 : i32
    return %c0_i32, %arg1 : i32, i32
  }
  func.func @transform_4(%arg0: i32, %arg1: i32, %arg2: i32, %arg3: memref<6xi32, #tpu.memory_space<smem>>, %arg4: memref<6xi32, #tpu.memory_space<smem>>, %arg5: memref<44xi32, #tpu.memory_space<smem>>, %arg6: memref<44xi32, #tpu.memory_space<smem>>) -> (i32, i32) {
    %c0_i32 = arith.constant 0 : i32
    return %arg0, %arg1 : i32, i32
  }
}

</mosaic_0001>

<llo_original>
// kernel: tpu_custom_call.1
$region0: #{tpu_custom_call.1}
  #allocation0 [shape = 'u32[]', space=smem, size = 0x4, offset = 0x4, fixed_abs, tag = 'smem constant byte address 0x4 - core index']
  #allocation1 [shape = 'u32[144,128]{1,0:T(1,128)}', space=vmem, size = 0x12000, scoped, tag = 'internal scratch']
  #allocation2 [shape = 's32[1]{0}', space=sflag, size = 0x4, scoped, tag = 'scoped memory for tpu_custom_call.1']
  #allocation3 [shape = 'u8[512]{0}', space=smem, size = 0x200, scoped, tag = 'prefetched SMEM operand 0']
  #allocation4 [shape = 'u8[512]{0}', space=smem, size = 0x200, scoped, tag = 'prefetched SMEM operand 1']
  #allocation5 [shape = 'u8[512]{0}', space=smem, size = 0x200, scoped, tag = 'prefetched SMEM operand 2']
  #allocation6 [shape = 'u8[512]{0}', space=smem, size = 0x200, scoped, tag = 'prefetched SMEM operand 3']
  %s0 = inlined_call_operand.vmem [shape: s32[6], index: 0, kind: input, shape index: {}]
  %s1 = inlined_call_operand.vmem [shape: s32[6], index: 1, kind: input, shape index: {}]
  %s2 = inlined_call_operand.vmem [shape: s32[44], index: 2, kind: input, shape index: {}]
  %s3 = inlined_call_operand.vmem [shape: s32[44], index: 3, kind: input, shape index: {}]
  %s4 = inlined_call_operand.vmem [shape: bf16[1408,128], index: 4, kind: input, shape index: {}]
  %s5 = inlined_call_operand.vmem [shape: s32[1408,1], index: 5, kind: input, shape index: {}]
  %s6 = inlined_call_operand.vmem [shape: bf16[128,128], index: 6, kind: input, shape index: {}]
  %s7 = inlined_call_operand.vmem [shape: f32[1,128], index: 7, kind: input, shape index: {}]
  %s8 = inlined_call_operand.hbm [shape: f32[768,128], index: 8, kind: output, shape index: {}]
  %s9 = sld [smem:[#allocation0]]
  $region89: #{tpu_custom_call.1} parent=0
    _
  %s11 = ssub.s32 1, %s9
  %s12 = scalar_select 0, %s11, %s9
  %s13 = sshll.u32 %s0, 4
  %s14 = int_to_ptr.vmem [resolvable:$true] %s13
  %16 = dma.vmem_to_smem %s14, 16, [#allocation3], [#allocation2]
  %s17 = sshll.u32 %s1, 4
  %s18 = int_to_ptr.vmem [resolvable:$true] %s17
  %20 = dma.vmem_to_smem %s18, 16, [#allocation4], [#allocation2]
  %s21 = sshll.u32 %s2, 4
  %s22 = int_to_ptr.vmem [resolvable:$true] %s21
  %24 = dma.vmem_to_smem %s22, 16, [#allocation5], [#allocation2]
  %s25 = sshll.u32 %s3, 4
  %s26 = int_to_ptr.vmem [resolvable:$true] %s25
  %28 = dma.vmem_to_smem %s26, 16, [#allocation6], [#allocation2]
  %29 = dma.done [#allocation2], 64
  %30 = sfence
  $region1: #{tpu_custom_call.1} parent=0
    #allocation7 [shape = 'u8[131072]{0}', space=vmem, size = 0x20000, scoped, tag = 'output window, operand 0']
    #allocation8 [shape = 's32[2]{0}', space=sflag, size = 0x8, scoped, tag = 'scoped memory for tpu_custom_call.1']
    %31 = vsyncpa [#allocation8], 0
    %s32 = scalar_lea.sflag [#allocation8], 1
    %33 = vsyncpa %s32, 0
    loop: start=0, step=1, limit=14
    $region2: #{tpu_custom_call.1} parent=1 // loop_pre_header
      _
    $region3: #{tpu_custom_call.1} parent=1 // loop_header
      %s35 = sphi 0, %s39
      %p36 = scmp.ge.s32.totalorder %s35, 14
      %s42 = sphi 0, %s61
      %s43 = sphi 0, %s57
      %s44 = sphi 0, %s53
      %s45 = sphi 0, %s42
      %s46 = sphi 0, %s43
      %s47 = sphi 0, %s44
      %s48 = sphi 0, %s45
      %s49 = sphi 0, %s46
      %s50 = sphi 0, %s47
      %s76 = sphi 0, %s78
      %s79 = sphi 0, %s76
      %s80 = sphi 0, %s79
      %s96 = sphi 0, %s80
      %s114 = sphi 0, %s116
      %s117 = sphi 0, %s114
      %s118 = sphi 0, %s117
      %s134 = sphi 0, %s118
      %s140 = sphi 0, %s142
      %s143 = sphi 0, %s140
      %s144 = sphi 0, %s143
      %s160 = sphi 0, %s144
      %s166 = sphi 0, %s168
      %s169 = sphi 0, %s166
      %s170 = sphi 0, %s169
      %s186 = sphi 0, %s170
      %s194 = sphi 0, %s196
      %s197 = sphi 0, %s194
      %s198 = sphi 0, %s197
      %s214 = sphi 0, %s198
    $region4: #{tpu_custom_call.1} parent=1 // loop_header_branch
      %38 = sbr.rel (%p36) target = $region8
    $region5: #{tpu_custom_call.1} parent=1 // loop_body
      %s40 = ssub.s32 %s35, 1
      %s41 = ssub.s32 %s35, 2
      %s51 = sadd.s32 1, %s44
      %p52 = scmp.ge.s32.totalorder %s51, 2
      %s53 = scalar_select %p52, 0, %s51
      %s54 = sadd.s32 1, %s43
      %s55 = scalar_select %p52, %s54, %s43
      %p56 = scmp.ge.s32.totalorder %s55, 1
      %s57 = scalar_select %p56, 0, %s55
      %s58 = sadd.s32 1, %s42
      %s59 = scalar_select %p56, %s58, %s42
      %p60 = scmp.ge.s32.totalorder %s59, 6
      %s61 = scalar_select %p60, 0, %s59
      %s62 = sld [smem:[#allocation3 + %s42]]
      %s63 = sld [smem:[#allocation4 + %s42]]
      %s64 = ssub.s32 %s63, 1
      %p65 = scmp.lt.s32.totalorder %s44, %s64
      %s66 = scalar_select %p65, %s44, %s64
      %s67 = sadd.s32 %s62, %s66
      %s68 = sld [smem:[#allocation3 + %s61]]
      %s69 = sld [smem:[#allocation4 + %s61]]
      %s70 = ssub.s32 %s69, 1
      %p71 = scmp.lt.s32.totalorder %s53, %s70
      %s72 = scalar_select %p71, %s53, %s70
      %s73 = sadd.s32 %s68, %s72
      %s74 = ssub.s32 %s67, %s73
      %p75 = scmp.eq.s32.totalorder %s74, 0
      %s77 = sadd.s32 %s76, 1
      %s78 = scalar_select %p75, %s76, %s77
      %p81 = pneg %p75
      %p82 = scmp.eq.s32.totalorder %s35, 11
      %p83 = por %p81, %p82
      %p84 = scmp.ne.s32.totalorder %s76, %s79
      %p85 = scmp.eq.s32.totalorder %s35, 0
      %p86 = por %p84, %p85
      %p87 = scmp.ne.s32.totalorder %s76, %s79
      %p88 = scmp.eq.s32.totalorder %s40, 11
      %p89 = por %p87, %p88
      %p90 = scmp.ne.s32.totalorder %s79, %s80
      %p91 = scmp.eq.s32.totalorder %s40, 0
      %p92 = por %p90, %p91
      %p93 = scmp.ne.s32.totalorder %s79, %s80
      %p94 = scmp.eq.s32.totalorder %s41, 11
      %p95 = por %p93, %p94
      %p97 = scmp.ne.s32.totalorder %s80, %s96
      %p98 = scmp.eq.s32.totalorder %s41, 0
      %p99 = por %p97, %p98
      %s100 = sld [smem:[#allocation3 + %s42]]
      %s101 = sld [smem:[#allocation4 + %s42]]
      %s102 = ssub.s32 %s101, 1
      %p103 = scmp.lt.s32.totalorder %s44, %s102
      %s104 = scalar_select %p103, %s44, %s102
      %s105 = sadd.s32 %s100, %s104
      %s106 = sld [smem:[#allocation3 + %s61]]
      %s107 = sld [smem:[#allocation4 + %s61]]
      %s108 = ssub.s32 %s107, 1
      %p109 = scmp.lt.s32.totalorder %s53, %s108
      %s110 = scalar_select %p109, %s53, %s108
      %s111 = sadd.s32 %s106, %s110
      %s112 = ssub.s32 %s105, %s111
      %p113 = scmp.eq.s32.totalorder %s112, 0
      %s115 = sadd.s32 %s114, 1
      %s116 = scalar_select %p113, %s114, %s115
      %p119 = pneg %p113
      %p120 = scmp.eq.s32.totalorder %s35, 11
      %p121 = por %p119, %p120
      %p122 = scmp.ne.s32.totalorder %s114, %s117
      %p123 = scmp.eq.s32.totalorder %s35, 0
      %p124 = por %p122, %p123
      %p125 = scmp.ne.s32.totalorder %s114, %s117
      %p126 = scmp.eq.s32.totalorder %s40, 11
      %p127 = por %p125, %p126
      %p128 = scmp.ne.s32.totalorder %s117, %s118
      %p129 = scmp.eq.s32.totalorder %s40, 0
      %p130 = por %p128, %p129
      %p131 = scmp.ne.s32.totalorder %s117, %s118
      %p132 = scmp.eq.s32.totalorder %s41, 11
      %p133 = por %p131, %p132
      %p135 = scmp.ne.s32.totalorder %s118, %s134
      %p136 = scmp.eq.s32.totalorder %s41, 0
      %p137 = por %p135, %p136
      %s138 = ssub.s32 %s43, %s57
      %p139 = scmp.eq.s32.totalorder %s138, 0
      %s141 = sadd.s32 %s140, 1
      %s142 = scalar_select %p139, %s140, %s141
      %p145 = pneg %p139
      %p146 = scmp.eq.s32.totalorder %s35, 11
      %p147 = por %p145, %p146
      %p148 = scmp.ne.s32.totalorder %s140, %s143
      %p149 = scmp.eq.s32.totalorder %s35, 0
      %p150 = por %p148, %p149
      %p151 = scmp.ne.s32.totalorder %s140, %s143
      %p152 = scmp.eq.s32.totalorder %s40, 11
      %p153 = por %p151, %p152
      %p154 = scmp.ne.s32.totalorder %s143, %s144
      %p155 = scmp.eq.s32.totalorder %s40, 0
      %p156 = por %p154, %p155
      %p157 = scmp.ne.s32.totalorder %s143, %s144
      %p158 = scmp.eq.s32.totalorder %s41, 11
      %p159 = por %p157, %p158
      %p161 = scmp.ne.s32.totalorder %s144, %s160
      %p162 = scmp.eq.s32.totalorder %s41, 0
      %p163 = por %p161, %p162
      %s164 = ssub.s32 %s43, %s57
      %p165 = scmp.eq.s32.totalorder %s164, 0
      %s167 = sadd.s32 %s166, 1
      %s168 = scalar_select %p165, %s166, %s167
      %p171 = pneg %p165
      %p172 = scmp.eq.s32.totalorder %s35, 11
      %p173 = por %p171, %p172
      %p174 = scmp.ne.s32.totalorder %s166, %s169
      %p175 = scmp.eq.s32.totalorder %s35, 0
      %p176 = por %p174, %p175
      %p177 = scmp.ne.s32.totalorder %s166, %s169
      %p178 = scmp.eq.s32.totalorder %s40, 11
      %p179 = por %p177, %p178
      %p180 = scmp.ne.s32.totalorder %s169, %s170
      %p181 = scmp.eq.s32.totalorder %s40, 0
      %p182 = por %p180, %p181
      %p183 = scmp.ne.s32.totalorder %s169, %s170
      %p184 = scmp.eq.s32.totalorder %s41, 11
      %p185 = por %p183, %p184
      %p187 = scmp.ne.s32.totalorder %s170, %s186
      %p188 = scmp.eq.s32.totalorder %s41, 0
      %p189 = por %p187, %p188
      %s190 = ssub.s32 %s42, %s61
      %s191 = ssub.s32 %s43, %s57
      %s192 = sor.u32 %s190, %s191
      %p193 = scmp.eq.s32.totalorder %s192, 0
      %s195 = sadd.s32 %s194, 1
      %s196 = scalar_select %p193, %s194, %s195
      %p199 = pneg %p193
      %p200 = scmp.eq.s32.totalorder %s35, 11
      %p201 = por %p199, %p200
      %p202 = scmp.ne.s32.totalorder %s194, %s197
      %p203 = scmp.eq.s32.totalorder %s35, 0
      %p204 = por %p202, %p203
      %p205 = scmp.ne.s32.totalorder %s194, %s197
      %p206 = scmp.eq.s32.totalorder %s40, 11
      %p207 = por %p205, %p206
      %p208 = scmp.ne.s32.totalorder %s197, %s198
      %p209 = scmp.eq.s32.totalorder %s40, 0
      %p210 = por %p208, %p209
      %p211 = scmp.ne.s32.totalorder %s197, %s198
      %p212 = scmp.eq.s32.totalorder %s41, 11
      %p213 = por %p211, %p212
      %p215 = scmp.ne.s32.totalorder %s198, %s214
      %p216 = scmp.eq.s32.totalorder %s41, 0
      %p217 = por %p215, %p216
      %p218 = scmp.le.s32.totalorder 1, %s35
      %p219 = scmp.lt.s32.totalorder %s35, 13
      %p220 = pnand %p218, %p219
      %p221 = pneg %p220
      // Predicated region
      $region9: #{tpu_custom_call.1} parent=5 // pred_check
        _
      $region10: #{tpu_custom_call.1} parent=5 // pred_check_branch
        %223 = sbr.rel (%p220) target = $region12
      $region11: #{tpu_custom_call.1} parent=5 // pred_region
        %s224 = ssub.s32 %s35, 1
        // Predicated region
        $region13: #{tpu_custom_call.1} parent=11 // pred_check
          %p225 = pneg %p156
        $region14: #{tpu_custom_call.1} parent=11 // pred_check_branch
          %227 = sbr.rel (%p225) target = $region16
        $region15: #{tpu_custom_call.1} parent=11 // pred_region
          %p228 = scmp.lt.s32.totalorder %s46, 0
          %s229 = scalar_select %p228, %s46, 0
          %s230 = smul.addr %s229, 4
          %s231 = scalar_lea.vmem %s6, %s230
        $region16: #{tpu_custom_call.1} parent=11 // pred_fallthru
          _
        // Predicated region
        $region17: #{tpu_custom_call.1} parent=11 // pred_check
          %p232 = pneg %p182
        $region18: #{tpu_custom_call.1} parent=11 // pred_check_branch
          %234 = sbr.rel (%p232) target = $region20
        $region19: #{tpu_custom_call.1} parent=11 // pred_region
          %p235 = scmp.lt.s32.totalorder %s46, 0
          %s236 = scalar_select %p235, %s46, 0
          %s237 = scalar_lea.vmem %s7, %s236
        $region20: #{tpu_custom_call.1} parent=11 // pred_fallthru
          _
      $region12: #{tpu_custom_call.1} parent=5 // pred_fallthru
        _
      %p238 = scmp.lt.s32.totalorder %s35, 12
      // Predicated region
      $region21: #{tpu_custom_call.1} parent=5 // pred_check
        %p239 = pneg %p238
      $region22: #{tpu_custom_call.1} parent=5 // pred_check_branch
        %241 = sbr.rel (%p239) target = $region24
      $region23: #{tpu_custom_call.1} parent=5 // pred_region
        // Predicated region
        $region25: #{tpu_custom_call.1} parent=23 // pred_check
          %p242 = pneg %p86
        $region26: #{tpu_custom_call.1} parent=23 // pred_check_branch
          %244 = sbr.rel (%p242) target = $region28
        $region27: #{tpu_custom_call.1} parent=23 // pred_region
          %s245 = sld [smem:[#allocation3 + %s42]]
          %s246 = sld [smem:[#allocation4 + %s42]]
          %s247 = ssub.s32 %s246, 1
          %p248 = scmp.lt.s32.totalorder %s44, %s247
          %s249 = scalar_select %p248, %s44, %s247
          %s250 = sadd.s32 %s245, %s249
          %s251 = smul.u32 16, %s250
          %p252 = scmp.lt.s32.totalorder %s251, 175
          %s253 = scalar_select %p252, %s251, 175
          %s254 = smul.addr %s253, 4
          %s255 = scalar_lea.vmem %s4, %s254
          %s256 = sld [smem:[#allocation3 + %s42]]
          %s257 = sld [smem:[#allocation4 + %s42]]
          %s258 = ssub.s32 %s257, 1
          %p259 = scmp.lt.s32.totalorder %s44, %s258
          %s260 = scalar_select %p259, %s44, %s258
          %s261 = sadd.s32 %s256, %s260
          %s262 = smul.u32 16, %s261
        $region28: #{tpu_custom_call.1} parent=23 // pred_fallthru
          _
        // Predicated region
        $region29: #{tpu_custom_call.1} parent=23 // pred_check
          %p263 = pneg %p124
        $region30: #{tpu_custom_call.1} parent=23 // pred_check_branch
          %265 = sbr.rel (%p263) target = $region32
        $region31: #{tpu_custom_call.1} parent=23 // pred_region
          %s266 = sld [smem:[#allocation3 + %s42]]
          %s267 = sld [smem:[#allocation4 + %s42]]
          %s268 = ssub.s32 %s267, 1
          %p269 = scmp.lt.s32.totalorder %s44, %s268
          %s270 = scalar_select %p269, %s44, %s268
          %s271 = sadd.s32 %s266, %s270
          %s272 = smul.u32 16, %s271
          %p273 = scmp.lt.s32.totalorder %s272, 175
          %s274 = scalar_select %p273, %s272, 175
          %s275 = smul.addr %s274, 8
          %s276 = scalar_lea.vmem %s5, %s275
          %s277 = sld [smem:[#allocation3 + %s42]]
          %s278 = sld [smem:[#allocation4 + %s42]]
          %s279 = ssub.s32 %s278, 1
          %p280 = scmp.lt.s32.totalorder %s44, %s279
          %s281 = scalar_select %p280, %s44, %s279
          %s282 = sadd.s32 %s277, %s281
          %s283 = smul.u32 16, %s282
        $region32: #{tpu_custom_call.1} parent=23 // pred_fallthru
          _
      $region24: #{tpu_custom_call.1} parent=5 // pred_fallthru
        _
      %p284 = scmp.le.s32.totalorder 1, %s35
      %p285 = scmp.lt.s32.totalorder %s35, 13
      %p286 = pnand %p284, %p285
      %p287 = pneg %p286
      // Predicated region
      $region33: #{tpu_custom_call.1} parent=5 // pred_check
        _
      $region34: #{tpu_custom_call.1} parent=5 // pred_check_branch
        %289 = sbr.rel (%p286) target = $region36
      $region35: #{tpu_custom_call.1} parent=5 // pred_region
        %s290 = ssub.s32 %s35, 1
        %s291 = sld [smem:[#allocation3 + %s45]]
        %s292 = sld [smem:[#allocation4 + %s45]]
        %s293 = ssub.s32 %s292, 1
        %p294 = scmp.lt.s32.totalorder %s47, %s293
        %s295 = scalar_select %p294, %s47, %s293
        %s296 = sadd.s32 %s291, %s295
        %s297 = smul.u32 16, %s296
        %p298 = scmp.lt.s32.totalorder %s297, 175
        %s299 = scalar_select %p298, %s297, 175
        %s300 = smul.addr %s299, 4
        %s301 = scalar_lea.vmem %s4, %s300
        %p302 = pneg %p92
        %p303 = pneg %p89
        %s304 = sld [smem:[#allocation3 + %s45]]
        %s305 = sld [smem:[#allocation4 + %s45]]
        %s306 = ssub.s32 %s305, 1
        %p307 = scmp.lt.s32.totalorder %s47, %s306
        %s308 = scalar_select %p307, %s47, %s306
        %s309 = sadd.s32 %s304, %s308
        %s310 = smul.u32 16, %s309
        %p311 = scmp.lt.s32.totalorder %s310, 175
        %s312 = scalar_select %p311, %s310, 175
        %s313 = smul.addr %s312, 8
        %s314 = scalar_lea.vmem %s5, %s313
        %p315 = pneg %p130
        %p316 = pneg %p127
        %p317 = scmp.lt.s32.totalorder %s46, 0
        %s318 = scalar_select %p317, %s46, 0
        %s319 = smul.addr %s318, 4
        %s320 = scalar_lea.vmem %s6, %s319
        %p321 = pneg %p156
        %p322 = pneg %p153
        %p323 = scmp.lt.s32.totalorder %s46, 0
        %s324 = scalar_select %p323, %s46, 0
        %s325 = scalar_lea.vmem %s7, %s324
        %p326 = pneg %p182
        %p327 = pneg %p179
        %p328 = pneg %p210
        %p329 = pneg %p207
        %s330 = sand.u32 %s197, 1
        %s331 = scalar_lea.sflag [#allocation8], %s330
        %s332 = sand.u32 %s197, 1
        %s333 = smul.addr %s332, 128
        %s334 = scalar_lea.vmem [#allocation7], %s333
        %s335 = sld [smem:[#allocation3 + %s45]]
        %s336 = sld [smem:[#allocation4 + %s45]]
        %s337 = ssub.s32 %s336, 1
        %p338 = scmp.lt.s32.totalorder %s47, %s337
        %s339 = scalar_select %p338, %s47, %s337
        %s340 = sadd.s32 %s335, %s339
        %s341 = smul.u32 16, %s340
        %p342 = scmp.lt.s32.totalorder %s341, 175
        %s343 = scalar_select %p342, %s341, 175
        %s344 = smul.addr %s343, 4
        %s345 = scalar_lea.vmem %s4, %s344
        %s346 = sld [smem:[#allocation3 + %s45]]
        %s347 = sld [smem:[#allocation4 + %s45]]
        %s348 = ssub.s32 %s347, 1
        %p349 = scmp.lt.s32.totalorder %s47, %s348
        %s350 = scalar_select %p349, %s47, %s348
        %s351 = sadd.s32 %s346, %s350
        %s352 = smul.u32 16, %s351
        %s353 = sld [smem:[#allocation3 + %s45]]
        %s354 = sld [smem:[#allocation4 + %s45]]
        %s355 = ssub.s32 %s354, 1
        %p356 = scmp.lt.s32.totalorder %s47, %s355
        %s357 = scalar_select %p356, %s47, %s355
        %s358 = sadd.s32 %s353, %s357
        %s359 = smul.u32 16, %s358
        %p360 = scmp.lt.s32.totalorder %s359, 175
        %s361 = scalar_select %p360, %s359, 175
        %s362 = smul.addr %s361, 8
        %s363 = scalar_lea.vmem %s5, %s362
        %s364 = sld [smem:[#allocation3 + %s45]]
        %s365 = sld [smem:[#allocation4 + %s45]]
        %s366 = ssub.s32 %s365, 1
        %p367 = scmp.lt.s32.totalorder %s47, %s366
        %s368 = scalar_select %p367, %s47, %s366
        %s369 = sadd.s32 %s364, %s368
        %s370 = smul.u32 16, %s369
        %p371 = scmp.lt.s32.totalorder %s46, 0
        %s372 = scalar_select %p371, %s46, 0
        %s373 = smul.addr %s372, 4
        %s374 = scalar_lea.vmem %s6, %s373
        %p375 = scmp.lt.s32.totalorder %s46, 0
        %s376 = scalar_select %p375, %s46, 0
        %s377 = scalar_lea.vmem %s7, %s376
        %s378 = smul.u32 16, %s45
        %s380 = sld [smem:[#allocation4 + %s45]]
        %p381 = scmp.eq.s32.totalorder %s47, 0
        // Predicated region
        $region37: #{tpu_custom_call.1} parent=35 // pred_check
          %p382 = pneg %p381
        $region38: #{tpu_custom_call.1} parent=35 // pred_check_branch
          %384 = sbr.rel (%p382) target = $region40
        $region39: #{tpu_custom_call.1} parent=35 // pred_region
          %385 = vst [vmem:[%s334] sm:$0xff] -3.4028235e+38
          %386 = vst [vmem:[%s334 + $0x8] sm:$0xff] -3.4028235e+38
          %387 = vst [vmem:[%s334 + $0x10] sm:$0xff] -3.4028235e+38
          %388 = vst [vmem:[%s334 + $0x18] sm:$0xff] -3.4028235e+38
          %389 = vst [vmem:[%s334 + $0x20] sm:$0xff] -3.4028235e+38
          %390 = vst [vmem:[%s334 + $0x28] sm:$0xff] -3.4028235e+38
          %391 = vst [vmem:[%s334 + $0x30] sm:$0xff] -3.4028235e+38
          %392 = vst [vmem:[%s334 + $0x38] sm:$0xff] -3.4028235e+38
          %393 = vst [vmem:[%s334 + $0x40] sm:$0xff] -3.4028235e+38
          %394 = vst [vmem:[%s334 + $0x48] sm:$0xff] -3.4028235e+38
          %395 = vst [vmem:[%s334 + $0x50] sm:$0xff] -3.4028235e+38
          %396 = vst [vmem:[%s334 + $0x58] sm:$0xff] -3.4028235e+38
          %397 = vst [vmem:[%s334 + $0x60] sm:$0xff] -3.4028235e+38
          %398 = vst [vmem:[%s334 + $0x68] sm:$0xff] -3.4028235e+38
          %399 = vst [vmem:[%s334 + $0x70] sm:$0xff] -3.4028235e+38
          %400 = vst [vmem:[%s334 + $0x78] sm:$0xff] -3.4028235e+38
        $region40: #{tpu_custom_call.1} parent=35 // pred_fallthru
          _
        %p401 = scmp.lt.s32.totalorder %s47, %s380
        // Predicated region
        $region41: #{tpu_custom_call.1} parent=35 // pred_check
          %p402 = pneg %p401
        $region42: #{tpu_custom_call.1} parent=35 // pred_check_branch
          %404 = sbr.rel (%p402) target = $region44
        $region43: #{tpu_custom_call.1} parent=35 // pred_region
          %v405 = vld [vmem:[%s345] sm:$0xf]
          %v406 = vld [vmem:[%s345 + $0x4] sm:$0xf]
          %v407 = vld [vmem:[%s345 + $0x8] sm:$0xf]
          %v408 = vld [vmem:[%s345 + $0xc] sm:$0xf]
          %v409 = vld [vmem:[%s345 + $0x10] sm:$0xf]
          %v410 = vld [vmem:[%s345 + $0x14] sm:$0xf]
          %v411 = vld [vmem:[%s345 + $0x18] sm:$0xf]
          %v412 = vld [vmem:[%s345 + $0x1c] sm:$0xf]
          %v413 = vld [vmem:[%s345 + $0x20] sm:$0xf]
          %v414 = vld [vmem:[%s345 + $0x24] sm:$0xf]
          %v415 = vld [vmem:[%s345 + $0x28] sm:$0xf]
          %v416 = vld [vmem:[%s345 + $0x2c] sm:$0xf]
          %v417 = vld [vmem:[%s345 + $0x30] sm:$0xf]
          %v418 = vld [vmem:[%s345 + $0x34] sm:$0xf]
          %v419 = vld [vmem:[%s345 + $0x38] sm:$0xf]
          %v420 = vld [vmem:[%s345 + $0x3c] sm:$0xf]
          %v421 = vld [vmem:[%s374] sm:$0xf]
          %v422 = vld [vmem:[%s374 + $0x4] sm:$0xf]
          %v423 = vld [vmem:[%s374 + $0x8] sm:$0xf]
          %v424 = vld [vmem:[%s374 + $0xc] sm:$0xf]
          %v425 = vld [vmem:[%s374 + $0x10] sm:$0xf]
          %v426 = vld [vmem:[%s374 + $0x14] sm:$0xf]
          %v427 = vld [vmem:[%s374 + $0x18] sm:$0xf]
          %v428 = vld [vmem:[%s374 + $0x1c] sm:$0xf]
          %v429 = vld [vmem:[%s374 + $0x20] sm:$0xf]
          %v430 = vld [vmem:[%s374 + $0x24] sm:$0xf]
          %v431 = vld [vmem:[%s374 + $0x28] sm:$0xf]
          %v432 = vld [vmem:[%s374 + $0x2c] sm:$0xf]
          %v433 = vld [vmem:[%s374 + $0x30] sm:$0xf]
          %v434 = vld [vmem:[%s374 + $0x34] sm:$0xf]
          %v435 = vld [vmem:[%s374 + $0x38] sm:$0xf]
          %v436 = vld [vmem:[%s374 + $0x3c] sm:$0xf]
          %v453 = vunpack.c.l.b16 %v405
          %v454 = vunpack.c.l.b16 %v406
          %v455 = vunpack.c.l.b16 %v407
          %v456 = vunpack.c.l.b16 %v408
          %v457 = vunpack.c.l.b16 %v409
          %v458 = vunpack.c.l.b16 %v410
          %v459 = vunpack.c.l.b16 %v411
          %v460 = vunpack.c.l.b16 %v412
          %v461 = vunpack.c.l.b16 %v413
          %v462 = vunpack.c.l.b16 %v414
          %v463 = vunpack.c.l.b16 %v415
          %v464 = vunpack.c.l.b16 %v416
          %v465 = vunpack.c.l.b16 %v417
          %v466 = vunpack.c.l.b16 %v418
          %v467 = vunpack.c.l.b16 %v419
          %v468 = vunpack.c.l.b16 %v420
          %v469 = vpack.c.b16 %v454, %v453
          %v470 = vpack.c.b16 %v456, %v455
          %v471 = vpack.c.b16 %v458, %v457
          %v472 = vpack.c.b16 %v460, %v459
          %v473 = vpack.c.b16 %v462, %v461
          %v474 = vpack.c.b16 %v464, %v463
          %v475 = vpack.c.b16 %v466, %v465
          %v476 = vpack.c.b16 %v468, %v467
          %v501 = vunpack.c.l.b16 %v421
          %v502 = vunpack.c.l.b16 %v422
          %v503 = vunpack.c.l.b16 %v423
          %v504 = vunpack.c.l.b16 %v424
          %v505 = vunpack.c.l.b16 %v425
          %v506 = vunpack.c.l.b16 %v426
          %v507 = vunpack.c.l.b16 %v427
          %v508 = vunpack.c.l.b16 %v428
          %v509 = vunpack.c.l.b16 %v429
          %v510 = vunpack.c.l.b16 %v430
          %v511 = vunpack.c.l.b16 %v431
          %v512 = vunpack.c.l.b16 %v432
          %v513 = vunpack.c.l.b16 %v433
          %v514 = vunpack.c.l.b16 %v434
          %v515 = vunpack.c.l.b16 %v435
          %v516 = vunpack.c.l.b16 %v436
          %v517 = vpack.c.b16 %v502, %v501
          %v518 = vpack.c.b16 %v504, %v503
          %v519 = vpack.c.b16 %v506, %v505
          %v520 = vpack.c.b16 %v508, %v507
          %v521 = vpack.c.b16 %v510, %v509
          %v522 = vpack.c.b16 %v512, %v511
          %v523 = vpack.c.b16 %v514, %v513
          %v524 = vpack.c.b16 %v516, %v515
          %533 = vmatprep.subr.bf16.mxu0 0
          %534 = vmatpush1.bf16.msra.mxu0 %v517
          %535 = vmatprep.subr.bf16.mxu0 0
          %536 = vmatpush1.bf16.msra.mxu0 %v518
          %537 = vmatprep.subr.bf16.mxu0 0
          %538 = vmatpush1.bf16.msra.mxu0 %v519
          %539 = vmatprep.subr.bf16.mxu0 0
          %540 = vmatpush1.bf16.msra.mxu0 %v520
          %541 = vmatprep.subr.bf16.mxu0 0
          %542 = vmatpush1.bf16.msra.mxu0 %v521
          %543 = vmatprep.subr.bf16.mxu0 0
          %544 = vmatpush1.bf16.msra.mxu0 %v522
          %545 = vmatprep.subr.bf16.mxu0 0
          %546 = vmatpush1.bf16.msra.mxu0 %v523
          %547 = vmatprep.subr.bf16.mxu0 0
          %548 = vmatpush1.bf16.msra.mxu0 %v524
          %549 = vmatprep.subr.bf16.mxu0 0
          %550 = vmatpush1.bf16.msra.mxu0 0
          %551 = vmatprep.subr.bf16.mxu0 0
          %552 = vmatpush1.bf16.msra.mxu0 0
          %553 = vmatprep.subr.bf16.mxu0 0
          %554 = vmatpush1.bf16.msra.mxu0 0
          %555 = vmatprep.subr.bf16.mxu0 0
          %556 = vmatpush1.bf16.msra.mxu0 0
          %557 = vmatprep.subr.bf16.mxu0 0
          %558 = vmatpush1.bf16.msra.mxu0 0
          %559 = vmatprep.subr.bf16.mxu0 0
          %560 = vmatpush1.bf16.msra.mxu0 0
          %561 = vmatprep.subr.bf16.mxu0 0
          %562 = vmatpush1.bf16.msra.mxu0 0
          %563 = vmatprep.subr.bf16.mxu0 0
          %564 = vmatpush1.bf16.msra.mxu0 0
          %565 = vmatprep.mubr.bf16.mxu0 0
          %566 = vmatmul.mubr.bf16.gmra.mrb[0].mxu0 %v469
          %v567 = vpop.f32.mrb[0].mxu0
          %v568 = vadd.f32 0.0, %v567
          %v569 = vpop.f32.mrb[0].mxu0
          %v570 = vpop.f32.mrb[0].mxu0
          %v571 = vadd.f32 0.0, %v570
          %v572 = vpop.f32.mrb[0].mxu0
          %573 = vmatprep.mubr.bf16.mxu0 0
          %574 = vmatmul.mubr.bf16.gmra.mrb[0].mxu0 %v470
          %v575 = vpop.f32.mrb[0].mxu0
          %v576 = vadd.f32 0.0, %v575
          %v577 = vpop.f32.mrb[0].mxu0
          %v578 = vpop.f32.mrb[0].mxu0
          %v579 = vadd.f32 0.0, %v578
          %v580 = vpop.f32.mrb[0].mxu0
          %581 = vmatprep.mubr.bf16.mxu0 0
          %582 = vmatmul.mubr.bf16.gmra.mrb[0].mxu0 %v471
          %v583 = vpop.f32.mrb[0].mxu0
          %v584 = vadd.f32 0.0, %v583
          %v585 = vpop.f32.mrb[0].mxu0
          %v586 = vpop.f32.mrb[0].mxu0
          %v587 = vadd.f32 0.0, %v586
          %v588 = vpop.f32.mrb[0].mxu0
          %589 = vmatprep.mubr.bf16.mxu0 0
          %590 = vmatmul.mubr.bf16.gmra.mrb[0].mxu0 %v472
          %v591 = vpop.f32.mrb[0].mxu0
          %v592 = vadd.f32 0.0, %v591
          %v593 = vpop.f32.mrb[0].mxu0
          %v594 = vpop.f32.mrb[0].mxu0
          %v595 = vadd.f32 0.0, %v594
          %v596 = vpop.f32.mrb[0].mxu0
          %597 = vmatprep.mubr.bf16.mxu0 0
          %598 = vmatmul.mubr.bf16.gmra.mrb[0].mxu0 %v473
          %v599 = vpop.f32.mrb[0].mxu0
          %v600 = vadd.f32 0.0, %v599
          %v601 = vpop.f32.mrb[0].mxu0
          %v602 = vpop.f32.mrb[0].mxu0
          %v603 = vadd.f32 0.0, %v602
          %v604 = vpop.f32.mrb[0].mxu0
          %605 = vmatprep.mubr.bf16.mxu0 0
          %606 = vmatmul.mubr.bf16.gmra.mrb[0].mxu0 %v474
          %v607 = vpop.f32.mrb[0].mxu0
          %v608 = vadd.f32 0.0, %v607
          %v609 = vpop.f32.mrb[0].mxu0
          %v610 = vpop.f32.mrb[0].mxu0
          %v611 = vadd.f32 0.0, %v610
          %v612 = vpop.f32.mrb[0].mxu0
          %613 = vmatprep.mubr.bf16.mxu0 0
          %614 = vmatmul.mubr.bf16.gmra.mrb[0].mxu0 %v475
          %v615 = vpop.f32.mrb[0].mxu0
          %v616 = vadd.f32 0.0, %v615
          %v617 = vpop.f32.mrb[0].mxu0
          %v618 = vpop.f32.mrb[0].mxu0
          %v619 = vadd.f32 0.0, %v618
          %v620 = vpop.f32.mrb[0].mxu0
          %621 = vmatprep.mubr.bf16.mxu0 0
          %622 = vmatmul.mubr.bf16.gmra.mrb[0].mxu0 %v476
          %v623 = vpop.f32.mrb[0].mxu0
          %v624 = vadd.f32 0.0, %v623
          %v625 = vpop.f32.mrb[0].mxu0
          %v626 = vpop.f32.mrb[0].mxu0
          %v627 = vadd.f32 0.0, %v626
          %v628 = vpop.f32.mrb[0].mxu0
          %629 = vdwg.mxu0
          %v630 = vld [vmem:[%s363] sm:$0xff]
          %v631 = vld [vmem:[%s363 + $0x8] sm:$0xff]
          %v632 = vld [vmem:[%s363 + $0x10] sm:$0xff]
          %v633 = vld [vmem:[%s363 + $0x18] sm:$0xff]
          %v634 = vld [vmem:[%s363 + $0x20] sm:$0xff]
          %v635 = vld [vmem:[%s363 + $0x28] sm:$0xff]
          %v636 = vld [vmem:[%s363 + $0x30] sm:$0xff]
          %v637 = vld [vmem:[%s363 + $0x38] sm:$0xff]
          %v638 = vld [vmem:[%s363 + $0x40] sm:$0xff]
          %v639 = vld [vmem:[%s363 + $0x48] sm:$0xff]
          %v640 = vld [vmem:[%s363 + $0x50] sm:$0xff]
          %v641 = vld [vmem:[%s363 + $0x58] sm:$0xff]
          %v642 = vld [vmem:[%s363 + $0x60] sm:$0xff]
          %v643 = vld [vmem:[%s363 + $0x68] sm:$0xff]
          %v644 = vld [vmem:[%s363 + $0x70] sm:$0xff]
          %v645 = vld [vmem:[%s363 + $0x78] sm:$0xff]
          %s646 = sld [smem:[#allocation3 + %s45]]
          %s647 = sadd.s32 %s646, %s47
          %s648 = smul.u32 %s647, 4
          %s649 = sld [smem:[#allocation5 + %s648]]
          %s650 = sld [smem:[#allocation6 + %s648]]
          // While loop
          $region45: #{tpu_custom_call.1} parent=43 // loop_pre_header
            _
          $region46: #{tpu_custom_call.1} parent=43 // loop_header
            %s652 = sphi 0, %s654
            %p653 = scmp.ge.s32.totalorder %s652, %s650
          $region47: #{tpu_custom_call.1} parent=43 // loop_header_branch
            %656 = sbr.rel (%p653) target = $region51
          $region48: #{tpu_custom_call.1} parent=43 // loop_body
            %s657 = sadd.s32 %s649, %s652
            %s658 = smul.u32 %s657, 8
            %v659 = vstv %s658
            %vm660 = vcmp.eq.s32.totalorder %v630, %v659
            %vm661 = vcmp.eq.s32.totalorder %v631, %v659
            %vm662 = vcmp.eq.s32.totalorder %v632, %v659
            %vm663 = vcmp.eq.s32.totalorder %v633, %v659
            %v664 = vsel %vm660, 1, 0
            %v665 = vsel %vm661, 1, 0
            %v666 = vsel %vm662, 1, 0
            %v667 = vsel %vm663, 1, 0
            %668 = vset.pattern.permute.xlu0 0
            %669 = vperm.xlu0 %668, %v664
            %v670 = vpop.permute.xlu0 %669
            %671 = vset.pattern.permute.xlu0 0
            %672 = vperm.xlu0 %671, %v665
            %v673 = vpop.permute.xlu0 %672
            %674 = vset.pattern.permute.xlu0 0
            %675 = vperm.xlu0 %674, %v666
            %v676 = vpop.permute.xlu0 %675
            %677 = vset.pattern.permute.xlu0 0
            %678 = vperm.xlu0 %677, %v667
            %v679 = vpop.permute.xlu0 %678
            %vm680 = vcmp.eq.s32.totalorder %v670, 1
            %vm681 = vcmp.eq.s32.totalorder %v673, 1
            %vm682 = vcmp.eq.s32.totalorder %v676, 1
            %vm683 = vcmp.eq.s32.totalorder %v679, 1
            %v684 = vsel %vm680, %v568, -3.4028235e+38
            %v685 = vsel %vm681, %v571, -3.4028235e+38
            %v686 = vsel %vm682, %v576, -3.4028235e+38
            %v687 = vsel %vm683, %v579, -3.4028235e+38
            %v688 = vmax.f32 %v684, %v685
            %v689 = vmax.f32 %v686, %v687
            %v690 = vmax.f32 %v688, %v689
            %v691 = vrot.slane %v690, 4
            %v692 = vmax.f32 %v690, %v691
            %v693 = vrot.slane %v692, 2
            %v694 = vmax.f32 %v692, %v693
            %v695 = vrot.slane %v694, 1
            %v696 = vmax.f32 %v694, %v695
            %s697 = sadd.s32 %s658, 1
            %v698 = vstv %s697
            %vm699 = vcmp.eq.s32.totalorder %v630, %v698
            %vm700 = vcmp.eq.s32.totalorder %v631, %v698
            %vm701 = vcmp.eq.s32.totalorder %v632, %v698
            %vm702 = vcmp.eq.s32.totalorder %v633, %v698
            %v703 = vsel %vm699, 1, 0
            %v704 = vsel %vm700, 1, 0
            %v705 = vsel %vm701, 1, 0
            %v706 = vsel %vm702, 1, 0
            %707 = vset.pattern.permute.xlu0 0
            %708 = vperm.xlu0 %707, %v703
            %v709 = vpop.permute.xlu0 %708
            %710 = vset.pattern.permute.xlu0 0
            %711 = vperm.xlu0 %710, %v704
            %v712 = vpop.permute.xlu0 %711
            %713 = vset.pattern.permute.xlu0 0
            %714 = vperm.xlu0 %713, %v705
            %v715 = vpop.permute.xlu0 %714
            %716 = vset.pattern.permute.xlu0 0
            %717 = vperm.xlu0 %716, %v706
            %v718 = vpop.permute.xlu0 %717
            %vm719 = vcmp.eq.s32.totalorder %v709, 1
            %vm720 = vcmp.eq.s32.totalorder %v712, 1
            %vm721 = vcmp.eq.s32.totalorder %v715, 1
            %vm722 = vcmp.eq.s32.totalorder %v718, 1
            %v723 = vsel %vm719, %v568, -3.4028235e+38
            %v724 = vsel %vm720, %v571, -3.4028235e+38
            %v725 = vsel %vm721, %v576, -3.4028235e+38
            %v726 = vsel %vm722, %v579, -3.4028235e+38
            %v727 = vmax.f32 %v723, %v724
            %v728 = vmax.f32 %v725, %v726
            %v729 = vmax.f32 %v727, %v728
            %v730 = vrot.slane %v729, 4
            %v731 = vmax.f32 %v729, %v730
            %v732 = vrot.slane %v731, 2
            %v733 = vmax.f32 %v731, %v732
            %v734 = vrot.slane %v733, 1
            %v735 = vmax.f32 %v733, %v734
            %s736 = sadd.s32 %s658, 2
            %v737 = vstv %s736
            %vm738 = vcmp.eq.s32.totalorder %v630, %v737
            %vm739 = vcmp.eq.s32.totalorder %v631, %v737
            %vm740 = vcmp.eq.s32.totalorder %v632, %v737
            %vm741 = vcmp.eq.s32.totalorder %v633, %v737
            %v742 = vsel %vm738, 1, 0
            %v743 = vsel %vm739, 1, 0
            %v744 = vsel %vm740, 1, 0
            %v745 = vsel %vm741, 1, 0
            %746 = vset.pattern.permute.xlu0 0
            %747 = vperm.xlu0 %746, %v742
            %v748 = vpop.permute.xlu0 %747
            %749 = vset.pattern.permute.xlu0 0
            %750 = vperm.xlu0 %749, %v743
            %v751 = vpop.permute.xlu0 %750
            %752 = vset.pattern.permute.xlu0 0
            %753 = vperm.xlu0 %752, %v744
            %v754 = vpop.permute.xlu0 %753
            %755 = vset.pattern.permute.xlu0 0
            %756 = vperm.xlu0 %755, %v745
            %v757 = vpop.permute.xlu0 %756
            %vm758 = vcmp.eq.s32.totalorder %v748, 1
            %vm759 = vcmp.eq.s32.totalorder %v751, 1
            %vm760 = vcmp.eq.s32.totalorder %v754, 1
            %vm761 = vcmp.eq.s32.totalorder %v757, 1
            %v762 = vsel %vm758, %v568, -3.4028235e+38
            %v763 = vsel %vm759, %v571, -3.4028235e+38
            %v764 = vsel %vm760, %v576, -3.4028235e+38
            %v765 = vsel %vm761, %v579, -3.4028235e+38
            %v766 = vmax.f32 %v762, %v763
            %v767 = vmax.f32 %v764, %v765
            %v768 = vmax.f32 %v766, %v767
            %v769 = vrot.slane %v768, 4
            %v770 = vmax.f32 %v768, %v769
            %v771 = vrot.slane %v770, 2
            %v772 = vmax.f32 %v770, %v771
            %v773 = vrot.slane %v772, 1
            %v774 = vmax.f32 %v772, %v773
            %s775 = sadd.s32 %s658, 3
            %v776 = vstv %s775
            %vm777 = vcmp.eq.s32.totalorder %v630, %v776
            %vm778 = vcmp.eq.s32.totalorder %v631, %v776
            %vm779 = vcmp.eq.s32.totalorder %v632, %v776
            %vm780 = vcmp.eq.s32.totalorder %v633, %v776
            %v781 = vsel %vm777, 1, 0
            %v782 = vsel %vm778, 1, 0
            %v783 = vsel %vm779, 1, 0
            %v784 = vsel %vm780, 1, 0
            %785 = vset.pattern.permute.xlu0 0
            %786 = vperm.xlu0 %785, %v781
            %v787 = vpop.permute.xlu0 %786
            %788 = vset.pattern.permute.xlu0 0
            %789 = vperm.xlu0 %788, %v782
            %v790 = vpop.permute.xlu0 %789
            %791 = vset.pattern.permute.xlu0 0
            %792 = vperm.xlu0 %791, %v783
            %v793 = vpop.permute.xlu0 %792
            %794 = vset.pattern.permute.xlu0 0
            %795 = vperm.xlu0 %794, %v784
            %v796 = vpop.permute.xlu0 %795
            %vm797 = vcmp.eq.s32.totalorder %v787, 1
            %vm798 = vcmp.eq.s32.totalorder %v790, 1
            %vm799 = vcmp.eq.s32.totalorder %v793, 1
            %vm800 = vcmp.eq.s32.totalorder %v796, 1
            %v801 = vsel %vm797, %v568, -3.4028235e+38
            %v802 = vsel %vm798, %v571, -3.4028235e+38
            %v803 = vsel %vm799, %v576, -3.4028235e+38
            %v804 = vsel %vm800, %v579, -3.4028235e+38
            %v805 = vmax.f32 %v801, %v802
            %v806 = vmax.f32 %v803, %v804
            %v807 = vmax.f32 %v805, %v806
            %v808 = vrot.slane %v807, 4
            %v809 = vmax.f32 %v807, %v808
            %v810 = vrot.slane %v809, 2
            %v811 = vmax.f32 %v809, %v810
            %v812 = vrot.slane %v811, 1
            %v813 = vmax.f32 %v811, %v812
            %s814 = sadd.s32 %s658, 4
            %v815 = vstv %s814
            %vm816 = vcmp.eq.s32.totalorder %v630, %v815
            %vm817 = vcmp.eq.s32.totalorder %v631, %v815
            %vm818 = vcmp.eq.s32.totalorder %v632, %v815
            %vm819 = vcmp.eq.s32.totalorder %v633, %v815
            %v820 = vsel %vm816, 1, 0
            %v821 = vsel %vm817, 1, 0
            %v822 = vsel %vm818, 1, 0
            %v823 = vsel %vm819, 1, 0
            %824 = vset.pattern.permute.xlu0 0
            %825 = vperm.xlu0 %824, %v820
            %v826 = vpop.permute.xlu0 %825
            %827 = vset.pattern.permute.xlu0 0
            %828 = vperm.xlu0 %827, %v821
            %v829 = vpop.permute.xlu0 %828
            %830 = vset.pattern.permute.xlu0 0
            %831 = vperm.xlu0 %830, %v822
            %v832 = vpop.permute.xlu0 %831
            %833 = vset.pattern.permute.xlu0 0
            %834 = vperm.xlu0 %833, %v823
            %v835 = vpop.permute.xlu0 %834
            %vm836 = vcmp.eq.s32.totalorder %v826, 1
            %vm837 = vcmp.eq.s32.totalorder %v829, 1
            %vm838 = vcmp.eq.s32.totalorder %v832, 1
            %vm839 = vcmp.eq.s32.totalorder %v835, 1
            %v840 = vsel %vm836, %v568, -3.4028235e+38
            %v841 = vsel %vm837, %v571, -3.4028235e+38
            %v842 = vsel %vm838, %v576, -3.4028235e+38
            %v843 = vsel %vm839, %v579, -3.4028235e+38
            %v844 = vmax.f32 %v840, %v841
            %v845 = vmax.f32 %v842, %v843
            %v846 = vmax.f32 %v844, %v845
            %v847 = vrot.slane %v846, 4
            %v848 = vmax.f32 %v846, %v847
            %v849 = vrot.slane %v848, 2
            %v850 = vmax.f32 %v848, %v849
            %v851 = vrot.slane %v850, 1
            %v852 = vmax.f32 %v850, %v851
            %s853 = sadd.s32 %s658, 5
            %v854 = vstv %s853
            %vm855 = vcmp.eq.s32.totalorder %v630, %v854
            %vm856 = vcmp.eq.s32.totalorder %v631, %v854
            %vm857 = vcmp.eq.s32.totalorder %v632, %v854
            %vm858 = vcmp.eq.s32.totalorder %v633, %v854
            %v859 = vsel %vm855, 1, 0
            %v860 = vsel %vm856, 1, 0
            %v861 = vsel %vm857, 1, 0
            %v862 = vsel %vm858, 1, 0
            %863 = vset.pattern.permute.xlu0 0
            %864 = vperm.xlu0 %863, %v859
            %v865 = vpop.permute.xlu0 %864
            %866 = vset.pattern.permute.xlu0 0
            %867 = vperm.xlu0 %866, %v860
            %v868 = vpop.permute.xlu0 %867
            %869 = vset.pattern.permute.xlu0 0
            %870 = vperm.xlu0 %869, %v861
            %v871 = vpop.permute.xlu0 %870
            %872 = vset.pattern.permute.xlu0 0
            %873 = vperm.xlu0 %872, %v862
            %v874 = vpop.permute.xlu0 %873
            %vm875 = vcmp.eq.s32.totalorder %v865, 1
            %vm876 = vcmp.eq.s32.totalorder %v868, 1
            %vm877 = vcmp.eq.s32.totalorder %v871, 1
            %vm878 = vcmp.eq.s32.totalorder %v874, 1
            %v879 = vsel %vm875, %v568, -3.4028235e+38
            %v880 = vsel %vm876, %v571, -3.4028235e+38
            %v881 = vsel %vm877, %v576, -3.4028235e+38
            %v882 = vsel %vm878, %v579, -3.4028235e+38
            %v883 = vmax.f32 %v879, %v880
            %v884 = vmax.f32 %v881, %v882
            %v885 = vmax.f32 %v883, %v884
            %v886 = vrot.slane %v885, 4
            %v887 = vmax.f32 %v885, %v886
            %v888 = vrot.slane %v887, 2
            %v889 = vmax.f32 %v887, %v888
            %v890 = vrot.slane %v889, 1
            %v891 = vmax.f32 %v889, %v890
            %s892 = sadd.s32 %s658, 6
            %v893 = vstv %s892
            %vm894 = vcmp.eq.s32.totalorder %v630, %v893
            %vm895 = vcmp.eq.s32.totalorder %v631, %v893
            %vm896 = vcmp.eq.s32.totalorder %v632, %v893
            %vm897 = vcmp.eq.s32.totalorder %v633, %v893
            %v898 = vsel %vm894, 1, 0
            %v899 = vsel %vm895, 1, 0
            %v900 = vsel %vm896, 1, 0
            %v901 = vsel %vm897, 1, 0
            %902 = vset.pattern.permute.xlu0 0
            %903 = vperm.xlu0 %902, %v898
            %v904 = vpop.permute.xlu0 %903
            %905 = vset.pattern.permute.xlu0 0
            %906 = vperm.xlu0 %905, %v899
            %v907 = vpop.permute.xlu0 %906
            %908 = vset.pattern.permute.xlu0 0
            %909 = vperm.xlu0 %908, %v900
            %v910 = vpop.permute.xlu0 %909
            %911 = vset.pattern.permute.xlu0 0
            %912 = vperm.xlu0 %911, %v901
            %v913 = vpop.permute.xlu0 %912
            %vm914 = vcmp.eq.s32.totalorder %v904, 1
            %vm915 = vcmp.eq.s32.totalorder %v907, 1
            %vm916 = vcmp.eq.s32.totalorder %v910, 1
            %vm917 = vcmp.eq.s32.totalorder %v913, 1
            %v918 = vsel %vm914, %v568, -3.4028235e+38
            %v919 = vsel %vm915, %v571, -3.4028235e+38
            %v920 = vsel %vm916, %v576, -3.4028235e+38
            %v921 = vsel %vm917, %v579, -3.4028235e+38
            %v922 = vmax.f32 %v918, %v919
            %v923 = vmax.f32 %v920, %v921
            %v924 = vmax.f32 %v922, %v923
            %v925 = vrot.slane %v924, 4
            %v926 = vmax.f32 %v924, %v925
            %v927 = vrot.slane %v926, 2
            %v928 = vmax.f32 %v926, %v927
            %v929 = vrot.slane %v928, 1
            %v930 = vmax.f32 %v928, %v929
            %s931 = sadd.s32 %s658, 7
            %v932 = vstv %s931
            %vm933 = vcmp.eq.s32.totalorder %v630, %v932
            %vm934 = vcmp.eq.s32.totalorder %v631, %v932
            %vm935 = vcmp.eq.s32.totalorder %v632, %v932
            %vm936 = vcmp.eq.s32.totalorder %v633, %v932
            %v937 = vsel %vm933, 1, 0
            %v938 = vsel %vm934, 1, 0
            %v939 = vsel %vm935, 1, 0
            %v940 = vsel %vm936, 1, 0
            %941 = vset.pattern.permute.xlu0 0
            %942 = vperm.xlu0 %941, %v937
            %v943 = vpop.permute.xlu0 %942
            %944 = vset.pattern.permute.xlu0 0
            %945 = vperm.xlu0 %944, %v938
            %v946 = vpop.permute.xlu0 %945
            %947 = vset.pattern.permute.xlu0 0
            %948 = vperm.xlu0 %947, %v939
            %v949 = vpop.permute.xlu0 %948
            %950 = vset.pattern.permute.xlu0 0
            %951 = vperm.xlu0 %950, %v940
            %v952 = vpop.permute.xlu0 %951
            %vm953 = vcmp.eq.s32.totalorder %v943, 1
            %vm954 = vcmp.eq.s32.totalorder %v946, 1
            %vm955 = vcmp.eq.s32.totalorder %v949, 1
            %vm956 = vcmp.eq.s32.totalorder %v952, 1
            %v957 = vsel %vm953, %v568, -3.4028235e+38
            %v958 = vsel %vm954, %v571, -3.4028235e+38
            %v959 = vsel %vm955, %v576, -3.4028235e+38
            %v960 = vsel %vm956, %v579, -3.4028235e+38
            %v961 = vmax.f32 %v957, %v958
            %v962 = vmax.f32 %v959, %v960
            %v963 = vmax.f32 %v961, %v962
            %v964 = vrot.slane %v963, 4
            %v965 = vmax.f32 %v963, %v964
            %v966 = vrot.slane %v965, 2
            %v967 = vmax.f32 %v965, %v966
            %v968 = vrot.slane %v967, 1
            %v969 = vmax.f32 %v967, %v968
            %vm970 = vcmask 1040384
            %v971 = vsel %vm970, %v696, %v735
            %vm972 = vcmask 1041408
            %v973 = vsel %vm972, %v971, %v774
            %vm974 = vcmask 1042432
            %v975 = vsel %vm974, %v973, %v813
            %vm976 = vcmask 1043456
            %v977 = vsel %vm976, %v975, %v852
            %vm978 = vcmask 1044480
            %v979 = vsel %vm978, %v977, %v891
            %vm980 = vcmask 1045504
            %v981 = vsel %vm980, %v979, %v930
            %vm982 = vcmask 1046528
            %v983 = vsel %vm982, %v981, %v969
            %s984 = scalar_lea.vmem %s334, %s658 [#allocation7]
            %v985 = vld [vmem:[%s984] sm:$0xff]
            %v986 = vmax.f32 %v985, %v983
            %987 = vst [vmem:[%s984] sm:$0xff] %v986
          $region49: #{tpu_custom_call.1} parent=43 // loop_footer
            %s654 = sadd.s32 %s652, 1
          $region50: #{tpu_custom_call.1} parent=43 // loop_footer_branch
            %651 = sbr.rel target = $region46
          $region51: #{tpu_custom_call.1} parent=43 // loop_exit
            _
          %s988 = sadd.s32 %s648, 1
          %s989 = sld [smem:[#allocation5 + %s988]]
          %s990 = sld [smem:[#allocation6 + %s988]]
          // While loop
          $region52: #{tpu_custom_call.1} parent=43 // loop_pre_header
            _
          $region53: #{tpu_custom_call.1} parent=43 // loop_header
            %s992 = sphi 0, %s994
            %p993 = scmp.ge.s32.totalorder %s992, %s990
          $region54: #{tpu_custom_call.1} parent=43 // loop_header_branch
            %996 = sbr.rel (%p993) target = $region58
          $region55: #{tpu_custom_call.1} parent=43 // loop_body
            %s997 = sadd.s32 %s989, %s992
            %s998 = smul.u32 %s997, 8
            %v999 = vstv %s998
            %vm1000 = vcmp.eq.s32.totalorder %v634, %v999
            %vm1001 = vcmp.eq.s32.totalorder %v635, %v999
            %vm1002 = vcmp.eq.s32.totalorder %v636, %v999
            %vm1003 = vcmp.eq.s32.totalorder %v637, %v999
            %v1004 = vsel %vm1000, 1, 0
            %v1005 = vsel %vm1001, 1, 0
            %v1006 = vsel %vm1002, 1, 0
            %v1007 = vsel %vm1003, 1, 0
            %1008 = vset.pattern.permute.xlu0 0
            %1009 = vperm.xlu0 %1008, %v1004
            %v1010 = vpop.permute.xlu0 %1009
            %1011 = vset.pattern.permute.xlu0 0
            %1012 = vperm.xlu0 %1011, %v1005
            %v1013 = vpop.permute.xlu0 %1012
            %1014 = vset.pattern.permute.xlu0 0
            %1015 = vperm.xlu0 %1014, %v1006
            %v1016 = vpop.permute.xlu0 %1015
            %1017 = vset.pattern.permute.xlu0 0
            %1018 = vperm.xlu0 %1017, %v1007
            %v1019 = vpop.permute.xlu0 %1018
            %vm1020 = vcmp.eq.s32.totalorder %v1010, 1
            %vm1021 = vcmp.eq.s32.totalorder %v1013, 1
            %vm1022 = vcmp.eq.s32.totalorder %v1016, 1
            %vm1023 = vcmp.eq.s32.totalorder %v1019, 1
            %v1024 = vsel %vm1020, %v584, -3.4028235e+38
            %v1025 = vsel %vm1021, %v587, -3.4028235e+38
            %v1026 = vsel %vm1022, %v592, -3.4028235e+38
            %v1027 = vsel %vm1023, %v595, -3.4028235e+38
            %v1028 = vmax.f32 %v1024, %v1025
            %v1029 = vmax.f32 %v1026, %v1027
            %v1030 = vmax.f32 %v1028, %v1029
            %v1031 = vrot.slane %v1030, 4
            %v1032 = vmax.f32 %v1030, %v1031
            %v1033 = vrot.slane %v1032, 2
            %v1034 = vmax.f32 %v1032, %v1033
            %v1035 = vrot.slane %v1034, 1
            %v1036 = vmax.f32 %v1034, %v1035
            %s1037 = sadd.s32 %s998, 1
            %v1038 = vstv %s1037
            %vm1039 = vcmp.eq.s32.totalorder %v634, %v1038
            %vm1040 = vcmp.eq.s32.totalorder %v635, %v1038
            %vm1041 = vcmp.eq.s32.totalorder %v636, %v1038
            %vm1042 = vcmp.eq.s32.totalorder %v637, %v1038
            %v1043 = vsel %vm1039, 1, 0
            %v1044 = vsel %vm1040, 1, 0
            %v1045 = vsel %vm1041, 1, 0
            %v1046 = vsel %vm1042, 1, 0
            %1047 = vset.pattern.permute.xlu0 0
            %1048 = vperm.xlu0 %1047, %v1043
            %v1049 = vpop.permute.xlu0 %1048
            %1050 = vset.pattern.permute.xlu0 0
            %1051 = vperm.xlu0 %1050, %v1044
            %v1052 = vpop.permute.xlu0 %1051
            %1053 = vset.pattern.permute.xlu0 0
            %1054 = vperm.xlu0 %1053, %v1045
            %v1055 = vpop.permute.xlu0 %1054
            %1056 = vset.pattern.permute.xlu0 0
            %1057 = vperm.xlu0 %1056, %v1046
            %v1058 = vpop.permute.xlu0 %1057
            %vm1059 = vcmp.eq.s32.totalorder %v1049, 1
            %vm1060 = vcmp.eq.s32.totalorder %v1052, 1
            %vm1061 = vcmp.eq.s32.totalorder %v1055, 1
            %vm1062 = vcmp.eq.s32.totalorder %v1058, 1
            %v1063 = vsel %vm1059, %v584, -3.4028235e+38
            %v1064 = vsel %vm1060, %v587, -3.4028235e+38
            %v1065 = vsel %vm1061, %v592, -3.4028235e+38
            %v1066 = vsel %vm1062, %v595, -3.4028235e+38
            %v1067 = vmax.f32 %v1063, %v1064
            %v1068 = vmax.f32 %v1065, %v1066
            %v1069 = vmax.f32 %v1067, %v1068
            %v1070 = vrot.slane %v1069, 4
            %v1071 = vmax.f32 %v1069, %v1070
            %v1072 = vrot.slane %v1071, 2
            %v1073 = vmax.f32 %v1071, %v1072
            %v1074 = vrot.slane %v1073, 1
            %v1075 = vmax.f32 %v1073, %v1074
            %s1076 = sadd.s32 %s998, 2
            %v1077 = vstv %s1076
            %vm1078 = vcmp.eq.s32.totalorder %v634, %v1077
            %vm1079 = vcmp.eq.s32.totalorder %v635, %v1077
            %vm1080 = vcmp.eq.s32.totalorder %v636, %v1077
            %vm1081 = vcmp.eq.s32.totalorder %v637, %v1077
            %v1082 = vsel %vm1078, 1, 0
            %v1083 = vsel %vm1079, 1, 0
            %v1084 = vsel %vm1080, 1, 0
            %v1085 = vsel %vm1081, 1, 0
            %1086 = vset.pattern.permute.xlu0 0
            %1087 = vperm.xlu0 %1086, %v1082
            %v1088 = vpop.permute.xlu0 %1087
            %1089 = vset.pattern.permute.xlu0 0
            %1090 = vperm.xlu0 %1089, %v1083
            %v1091 = vpop.permute.xlu0 %1090
            %1092 = vset.pattern.permute.xlu0 0
            %1093 = vperm.xlu0 %1092, %v1084
            %v1094 = vpop.permute.xlu0 %1093
            %1095 = vset.pattern.permute.xlu0 0
            %1096 = vperm.xlu0 %1095, %v1085
            %v1097 = vpop.permute.xlu0 %1096
            %vm1098 = vcmp.eq.s32.totalorder %v1088, 1
            %vm1099 = vcmp.eq.s32.totalorder %v1091, 1
            %vm1100 = vcmp.eq.s32.totalorder %v1094, 1
            %vm1101 = vcmp.eq.s32.totalorder %v1097, 1
            %v1102 = vsel %vm1098, %v584, -3.4028235e+38
            %v1103 = vsel %vm1099, %v587, -3.4028235e+38
            %v1104 = vsel %vm1100, %v592, -3.4028235e+38
            %v1105 = vsel %vm1101, %v595, -3.4028235e+38
            %v1106 = vmax.f32 %v1102, %v1103
            %v1107 = vmax.f32 %v1104, %v1105
            %v1108 = vmax.f32 %v1106, %v1107
            %v1109 = vrot.slane %v1108, 4
            %v1110 = vmax.f32 %v1108, %v1109
            %v1111 = vrot.slane %v1110, 2
            %v1112 = vmax.f32 %v1110, %v1111
            %v1113 = vrot.slane %v1112, 1
            %v1114 = vmax.f32 %v1112, %v1113
            %s1115 = sadd.s32 %s998, 3
            %v1116 = vstv %s1115
            %vm1117 = vcmp.eq.s32.totalorder %v634, %v1116
            %vm1118 = vcmp.eq.s32.totalorder %v635, %v1116
            %vm1119 = vcmp.eq.s32.totalorder %v636, %v1116
            %vm1120 = vcmp.eq.s32.totalorder %v637, %v1116
            %v1121 = vsel %vm1117, 1, 0
            %v1122 = vsel %vm1118, 1, 0
            %v1123 = vsel %vm1119, 1, 0
            %v1124 = vsel %vm1120, 1, 0
            %1125 = vset.pattern.permute.xlu0 0
            %1126 = vperm.xlu0 %1125, %v1121
            %v1127 = vpop.permute.xlu0 %1126
            %1128 = vset.pattern.permute.xlu0 0
            %1129 = vperm.xlu0 %1128, %v1122
            %v1130 = vpop.permute.xlu0 %1129
            %1131 = vset.pattern.permute.xlu0 0
            %1132 = vperm.xlu0 %1131, %v1123
            %v1133 = vpop.permute.xlu0 %1132
            %1134 = vset.pattern.permute.xlu0 0
            %1135 = vperm.xlu0 %1134, %v1124
            %v1136 = vpop.permute.xlu0 %1135
            %vm1137 = vcmp.eq.s32.totalorder %v1127, 1
            %vm1138 = vcmp.eq.s32.totalorder %v1130, 1
            %vm1139 = vcmp.eq.s32.totalorder %v1133, 1
            %vm1140 = vcmp.eq.s32.totalorder %v1136, 1
            %v1141 = vsel %vm1137, %v584, -3.4028235e+38
            %v1142 = vsel %vm1138, %v587, -3.4028235e+38
            %v1143 = vsel %vm1139, %v592, -3.4028235e+38
            %v1144 = vsel %vm1140, %v595, -3.4028235e+38
            %v1145 = vmax.f32 %v1141, %v1142
            %v1146 = vmax.f32 %v1143, %v1144
            %v1147 = vmax.f32 %v1145, %v1146
            %v1148 = vrot.slane %v1147, 4
            %v1149 = vmax.f32 %v1147, %v1148
            %v1150 = vrot.slane %v1149, 2
            %v1151 = vmax.f32 %v1149, %v1150
            %v1152 = vrot.slane %v1151, 1
            %v1153 = vmax.f32 %v1151, %v1152
            %s1154 = sadd.s32 %s998, 4
            %v1155 = vstv %s1154
            %vm1156 = vcmp.eq.s32.totalorder %v634, %v1155
            %vm1157 = vcmp.eq.s32.totalorder %v635, %v1155
            %vm1158 = vcmp.eq.s32.totalorder %v636, %v1155
            %vm1159 = vcmp.eq.s32.totalorder %v637, %v1155
            %v1160 = vsel %vm1156, 1, 0
            %v1161 = vsel %vm1157, 1, 0
            %v1162 = vsel %vm1158, 1, 0
            %v1163 = vsel %vm1159, 1, 0
            %1164 = vset.pattern.permute.xlu0 0
            %1165 = vperm.xlu0 %1164, %v1160
            %v1166 = vpop.permute.xlu0 %1165
            %1167 = vset.pattern.permute.xlu0 0
            %1168 = vperm.xlu0 %1167, %v1161
            %v1169 = vpop.permute.xlu0 %1168
            %1170 = vset.pattern.permute.xlu0 0
            %1171 = vperm.xlu0 %1170, %v1162
            %v1172 = vpop.permute.xlu0 %1171
            %1173 = vset.pattern.permute.xlu0 0
            %1174 = vperm.xlu0 %1173, %v1163
            %v1175 = vpop.permute.xlu0 %1174
            %vm1176 = vcmp.eq.s32.totalorder %v1166, 1
            %vm1177 = vcmp.eq.s32.totalorder %v1169, 1
            %vm1178 = vcmp.eq.s32.totalorder %v1172, 1
            %vm1179 = vcmp.eq.s32.totalorder %v1175, 1
            %v1180 = vsel %vm1176, %v584, -3.4028235e+38
            %v1181 = vsel %vm1177, %v587, -3.4028235e+38
            %v1182 = vsel %vm1178, %v592, -3.4028235e+38
            %v1183 = vsel %vm1179, %v595, -3.4028235e+38
            %v1184 = vmax.f32 %v1180, %v1181
            %v1185 = vmax.f32 %v1182, %v1183
            %v1186 = vmax.f32 %v1184, %v1185
            %v1187 = vrot.slane %v1186, 4
            %v1188 = vmax.f32 %v1186, %v1187
            %v1189 = vrot.slane %v1188, 2
            %v1190 = vmax.f32 %v1188, %v1189
            %v1191 = vrot.slane %v1190, 1
            %v1192 = vmax.f32 %v1190, %v1191
            %s1193 = sadd.s32 %s998, 5
            %v1194 = vstv %s1193
            %vm1195 = vcmp.eq.s32.totalorder %v634, %v1194
            %vm1196 = vcmp.eq.s32.totalorder %v635, %v1194
            %vm1197 = vcmp.eq.s32.totalorder %v636, %v1194
            %vm1198 = vcmp.eq.s32.totalorder %v637, %v1194
            %v1199 = vsel %vm1195, 1, 0
            %v1200 = vsel %vm1196, 1, 0
            %v1201 = vsel %vm1197, 1, 0
            %v1202 = vsel %vm1198, 1, 0
            %1203 = vset.pattern.permute.xlu0 0
            %1204 = vperm.xlu0 %1203, %v1199
            %v1205 = vpop.permute.xlu0 %1204
            %1206 = vset.pattern.permute.xlu0 0
            %1207 = vperm.xlu0 %1206, %v1200
            %v1208 = vpop.permute.xlu0 %1207
            %1209 = vset.pattern.permute.xlu0 0
            %1210 = vperm.xlu0 %1209, %v1201
            %v1211 = vpop.permute.xlu0 %1210
            %1212 = vset.pattern.permute.xlu0 0
            %1213 = vperm.xlu0 %1212, %v1202
            %v1214 = vpop.permute.xlu0 %1213
            %vm1215 = vcmp.eq.s32.totalorder %v1205, 1
            %vm1216 = vcmp.eq.s32.totalorder %v1208, 1
            %vm1217 = vcmp.eq.s32.totalorder %v1211, 1
            %vm1218 = vcmp.eq.s32.totalorder %v1214, 1
            %v1219 = vsel %vm1215, %v584, -3.4028235e+38
            %v1220 = vsel %vm1216, %v587, -3.4028235e+38
            %v1221 = vsel %vm1217, %v592, -3.4028235e+38
            %v1222 = vsel %vm1218, %v595, -3.4028235e+38
            %v1223 = vmax.f32 %v1219, %v1220
            %v1224 = vmax.f32 %v1221, %v1222
            %v1225 = vmax.f32 %v1223, %v1224
            %v1226 = vrot.slane %v1225, 4
            %v1227 = vmax.f32 %v1225, %v1226
            %v1228 = vrot.slane %v1227, 2
            %v1229 = vmax.f32 %v1227, %v1228
            %v1230 = vrot.slane %v1229, 1
            %v1231 = vmax.f32 %v1229, %v1230
            %s1232 = sadd.s32 %s998, 6
            %v1233 = vstv %s1232
            %vm1234 = vcmp.eq.s32.totalorder %v634, %v1233
            %vm1235 = vcmp.eq.s32.totalorder %v635, %v1233
            %vm1236 = vcmp.eq.s32.totalorder %v636, %v1233
            %vm1237 = vcmp.eq.s32.totalorder %v637, %v1233
            %v1238 = vsel %vm1234, 1, 0
            %v1239 = vsel %vm1235, 1, 0
            %v1240 = vsel %vm1236, 1, 0
            %v1241 = vsel %vm1237, 1, 0
            %1242 = vset.pattern.permute.xlu0 0
            %1243 = vperm.xlu0 %1242, %v1238
            %v1244 = vpop.permute.xlu0 %1243
            %1245 = vset.pattern.permute.xlu0 0
            %1246 = vperm.xlu0 %1245, %v1239
            %v1247 = vpop.permute.xlu0 %1246
            %1248 = vset.pattern.permute.xlu0 0
            %1249 = vperm.xlu0 %1248, %v1240
            %v1250 = vpop.permute.xlu0 %1249
            %1251 = vset.pattern.permute.xlu0 0
            %1252 = vperm.xlu0 %1251, %v1241
            %v1253 = vpop.permute.xlu0 %1252
            %vm1254 = vcmp.eq.s32.totalorder %v1244, 1
            %vm1255 = vcmp.eq.s32.totalorder %v1247, 1
            %vm1256 = vcmp.eq.s32.totalorder %v1250, 1
            %vm1257 = vcmp.eq.s32.totalorder %v1253, 1
            %v1258 = vsel %vm1254, %v584, -3.4028235e+38
            %v1259 = vsel %vm1255, %v587, -3.4028235e+38
            %v1260 = vsel %vm1256, %v592, -3.4028235e+38
            %v1261 = vsel %vm1257, %v595, -3.4028235e+38
            %v1262 = vmax.f32 %v1258, %v1259
            %v1263 = vmax.f32 %v1260, %v1261
            %v1264 = vmax.f32 %v1262, %v1263
            %v1265 = vrot.slane %v1264, 4
            %v1266 = vmax.f32 %v1264, %v1265
            %v1267 = vrot.slane %v1266, 2
            %v1268 = vmax.f32 %v1266, %v1267
            %v1269 = vrot.slane %v1268, 1
            %v1270 = vmax.f32 %v1268, %v1269
            %s1271 = sadd.s32 %s998, 7
            %v1272 = vstv %s1271
            %vm1273 = vcmp.eq.s32.totalorder %v634, %v1272
            %vm1274 = vcmp.eq.s32.totalorder %v635, %v1272
            %vm1275 = vcmp.eq.s32.totalorder %v636, %v1272
            %vm1276 = vcmp.eq.s32.totalorder %v637, %v1272
            %v1277 = vsel %vm1273, 1, 0
            %v1278 = vsel %vm1274, 1, 0
            %v1279 = vsel %vm1275, 1, 0
            %v1280 = vsel %vm1276, 1, 0
            %1281 = vset.pattern.permute.xlu0 0
            %1282 = vperm.xlu0 %1281, %v1277
            %v1283 = vpop.permute.xlu0 %1282
            %1284 = vset.pattern.permute.xlu0 0
            %1285 = vperm.xlu0 %1284, %v1278
            %v1286 = vpop.permute.xlu0 %1285
            %1287 = vset.pattern.permute.xlu0 0
            %1288 = vperm.xlu0 %1287, %v1279
            %v1289 = vpop.permute.xlu0 %1288
            %1290 = vset.pattern.permute.xlu0 0
            %1291 = vperm.xlu0 %1290, %v1280
            %v1292 = vpop.permute.xlu0 %1291
            %vm1293 = vcmp.eq.s32.totalorder %v1283, 1
            %vm1294 = vcmp.eq.s32.totalorder %v1286, 1
            %vm1295 = vcmp.eq.s32.totalorder %v1289, 1
            %vm1296 = vcmp.eq.s32.totalorder %v1292, 1
            %v1297 = vsel %vm1293, %v584, -3.4028235e+38
            %v1298 = vsel %vm1294, %v587, -3.4028235e+38
            %v1299 = vsel %vm1295, %v592, -3.4028235e+38
            %v1300 = vsel %vm1296, %v595, -3.4028235e+38
            %v1301 = vmax.f32 %v1297, %v1298
            %v1302 = vmax.f32 %v1299, %v1300
            %v1303 = vmax.f32 %v1301, %v1302
            %v1304 = vrot.slane %v1303, 4
            %v1305 = vmax.f32 %v1303, %v1304
            %v1306 = vrot.slane %v1305, 2
            %v1307 = vmax.f32 %v1305, %v1306
            %v1308 = vrot.slane %v1307, 1
            %v1309 = vmax.f32 %v1307, %v1308
            %vm1310 = vcmask 1040384
            %v1311 = vsel %vm1310, %v1036, %v1075
            %vm1312 = vcmask 1041408
            %v1313 = vsel %vm1312, %v1311, %v1114
            %vm1314 = vcmask 1042432
            %v1315 = vsel %vm1314, %v1313, %v1153
            %vm1316 = vcmask 1043456
            %v1317 = vsel %vm1316, %v1315, %v1192
            %vm1318 = vcmask 1044480
            %v1319 = vsel %vm1318, %v1317, %v1231
            %vm1320 = vcmask 1045504
            %v1321 = vsel %vm1320, %v1319, %v1270
            %vm1322 = vcmask 1046528
            %v1323 = vsel %vm1322, %v1321, %v1309
            %s1324 = scalar_lea.vmem %s334, %s998 [#allocation7]
            %v1325 = vld [vmem:[%s1324] sm:$0xff]
            %v1326 = vmax.f32 %v1325, %v1323
            %1327 = vst [vmem:[%s1324] sm:$0xff] %v1326
          $region56: #{tpu_custom_call.1} parent=43 // loop_footer
            %s994 = sadd.s32 %s992, 1
          $region57: #{tpu_custom_call.1} parent=43 // loop_footer_branch
            %991 = sbr.rel target = $region53
          $region58: #{tpu_custom_call.1} parent=43 // loop_exit
            _
          %s1328 = sadd.s32 %s648, 2
          %s1329 = sld [smem:[#allocation5 + %s1328]]
          %s1330 = sld [smem:[#allocation6 + %s1328]]
          // While loop
          $region59: #{tpu_custom_call.1} parent=43 // loop_pre_header
            _
          $region60: #{tpu_custom_call.1} parent=43 // loop_header
            %s1332 = sphi 0, %s1334
            %p1333 = scmp.ge.s32.totalorder %s1332, %s1330
          $region61: #{tpu_custom_call.1} parent=43 // loop_header_branch
            %1336 = sbr.rel (%p1333) target = $region65
          $region62: #{tpu_custom_call.1} parent=43 // loop_body
            %s1337 = sadd.s32 %s1329, %s1332
            %s1338 = smul.u32 %s1337, 8
            %v1339 = vstv %s1338
            %vm1340 = vcmp.eq.s32.totalorder %v638, %v1339
            %vm1341 = vcmp.eq.s32.totalorder %v639, %v1339
            %vm1342 = vcmp.eq.s32.totalorder %v640, %v1339
            %vm1343 = vcmp.eq.s32.totalorder %v641, %v1339
            %v1344 = vsel %vm1340, 1, 0
            %v1345 = vsel %vm1341, 1, 0
            %v1346 = vsel %vm1342, 1, 0
            %v1347 = vsel %vm1343, 1, 0
            %1348 = vset.pattern.permute.xlu0 0
            %1349 = vperm.xlu0 %1348, %v1344
            %v1350 = vpop.permute.xlu0 %1349
            %1351 = vset.pattern.permute.xlu0 0
            %1352 = vperm.xlu0 %1351, %v1345
            %v1353 = vpop.permute.xlu0 %1352
            %1354 = vset.pattern.permute.xlu0 0
            %1355 = vperm.xlu0 %1354, %v1346
            %v1356 = vpop.permute.xlu0 %1355
            %1357 = vset.pattern.permute.xlu0 0
            %1358 = vperm.xlu0 %1357, %v1347
            %v1359 = vpop.permute.xlu0 %1358
            %vm1360 = vcmp.eq.s32.totalorder %v1350, 1
            %vm1361 = vcmp.eq.s32.totalorder %v1353, 1
            %vm1362 = vcmp.eq.s32.totalorder %v1356, 1
            %vm1363 = vcmp.eq.s32.totalorder %v1359, 1
            %v1364 = vsel %vm1360, %v600, -3.4028235e+38
            %v1365 = vsel %vm1361, %v603, -3.4028235e+38
            %v1366 = vsel %vm1362, %v608, -3.4028235e+38
            %v1367 = vsel %vm1363, %v611, -3.4028235e+38
            %v1368 = vmax.f32 %v1364, %v1365
            %v1369 = vmax.f32 %v1366, %v1367
            %v1370 = vmax.f32 %v1368, %v1369
            %v1371 = vrot.slane %v1370, 4
            %v1372 = vmax.f32 %v1370, %v1371
            %v1373 = vrot.slane %v1372, 2
            %v1374 = vmax.f32 %v1372, %v1373
            %v1375 = vrot.slane %v1374, 1
            %v1376 = vmax.f32 %v1374, %v1375
            %s1377 = sadd.s32 %s1338, 1
            %v1378 = vstv %s1377
            %vm1379 = vcmp.eq.s32.totalorder %v638, %v1378
            %vm1380 = vcmp.eq.s32.totalorder %v639, %v1378
            %vm1381 = vcmp.eq.s32.totalorder %v640, %v1378
            %vm1382 = vcmp.eq.s32.totalorder %v641, %v1378
            %v1383 = vsel %vm1379, 1, 0
            %v1384 = vsel %vm1380, 1, 0
            %v1385 = vsel %vm1381, 1, 0
            %v1386 = vsel %vm1382, 1, 0
            %1387 = vset.pattern.permute.xlu0 0
            %1388 = vperm.xlu0 %1387, %v1383
            %v1389 = vpop.permute.xlu0 %1388
            %1390 = vset.pattern.permute.xlu0 0
            %1391 = vperm.xlu0 %1390, %v1384
            %v1392 = vpop.permute.xlu0 %1391
            %1393 = vset.pattern.permute.xlu0 0
            %1394 = vperm.xlu0 %1393, %v1385
            %v1395 = vpop.permute.xlu0 %1394
            %1396 = vset.pattern.permute.xlu0 0
            %1397 = vperm.xlu0 %1396, %v1386
            %v1398 = vpop.permute.xlu0 %1397
            %vm1399 = vcmp.eq.s32.totalorder %v1389, 1
            %vm1400 = vcmp.eq.s32.totalorder %v1392, 1
            %vm1401 = vcmp.eq.s32.totalorder %v1395, 1
            %vm1402 = vcmp.eq.s32.totalorder %v1398, 1
            %v1403 = vsel %vm1399, %v600, -3.4028235e+38
            %v1404 = vsel %vm1400, %v603, -3.4028235e+38
            %v1405 = vsel %vm1401, %v608, -3.4028235e+38
            %v1406 = vsel %vm1402, %v611, -3.4028235e+38
            %v1407 = vmax.f32 %v1403, %v1404
            %v1408 = vmax.f32 %v1405, %v1406
            %v1409 = vmax.f32 %v1407, %v1408
            %v1410 = vrot.slane %v1409, 4
            %v1411 = vmax.f32 %v1409, %v1410
            %v1412 = vrot.slane %v1411, 2
            %v1413 = vmax.f32 %v1411, %v1412
            %v1414 = vrot.slane %v1413, 1
            %v1415 = vmax.f32 %v1413, %v1414
            %s1416 = sadd.s32 %s1338, 2
            %v1417 = vstv %s1416
            %vm1418 = vcmp.eq.s32.totalorder %v638, %v1417
            %vm1419 = vcmp.eq.s32.totalorder %v639, %v1417
            %vm1420 = vcmp.eq.s32.totalorder %v640, %v1417
            %vm1421 = vcmp.eq.s32.totalorder %v641, %v1417
            %v1422 = vsel %vm1418, 1, 0
            %v1423 = vsel %vm1419, 1, 0
            %v1424 = vsel %vm1420, 1, 0
            %v1425 = vsel %vm1421, 1, 0
            %1426 = vset.pattern.permute.xlu0 0
            %1427 = vperm.xlu0 %1426, %v1422
            %v1428 = vpop.permute.xlu0 %1427
            %1429 = vset.pattern.permute.xlu0 0
            %1430 = vperm.xlu0 %1429, %v1423
            %v1431 = vpop.permute.xlu0 %1430
            %1432 = vset.pattern.permute.xlu0 0
            %1433 = vperm.xlu0 %1432, %v1424
            %v1434 = vpop.permute.xlu0 %1433
            %1435 = vset.pattern.permute.xlu0 0
            %1436 = vperm.xlu0 %1435, %v1425
            %v1437 = vpop.permute.xlu0 %1436
            %vm1438 = vcmp.eq.s32.totalorder %v1428, 1
            %vm1439 = vcmp.eq.s32.totalorder %v1431, 1
            %vm1440 = vcmp.eq.s32.totalorder %v1434, 1
            %vm1441 = vcmp.eq.s32.totalorder %v1437, 1
            %v1442 = vsel %vm1438, %v600, -3.4028235e+38
            %v1443 = vsel %vm1439, %v603, -3.4028235e+38
            %v1444 = vsel %vm1440, %v608, -3.4028235e+38
            %v1445 = vsel %vm1441, %v611, -3.4028235e+38
            %v1446 = vmax.f32 %v1442, %v1443
            %v1447 = vmax.f32 %v1444, %v1445
            %v1448 = vmax.f32 %v1446, %v1447
            %v1449 = vrot.slane %v1448, 4
            %v1450 = vmax.f32 %v1448, %v1449
            %v1451 = vrot.slane %v1450, 2
            %v1452 = vmax.f32 %v1450, %v1451
            %v1453 = vrot.slane %v1452, 1
            %v1454 = vmax.f32 %v1452, %v1453
            %s1455 = sadd.s32 %s1338, 3
            %v1456 = vstv %s1455
            %vm1457 = vcmp.eq.s32.totalorder %v638, %v1456
            %vm1458 = vcmp.eq.s32.totalorder %v639, %v1456
            %vm1459 = vcmp.eq.s32.totalorder %v640, %v1456
            %vm1460 = vcmp.eq.s32.totalorder %v641, %v1456
            %v1461 = vsel %vm1457, 1, 0
            %v1462 = vsel %vm1458, 1, 0
            %v1463 = vsel %vm1459, 1, 0
            %v1464 = vsel %vm1460, 1, 0
            %1465 = vset.pattern.permute.xlu0 0
            %1466 = vperm.xlu0 %1465, %v1461
            %v1467 = vpop.permute.xlu0 %1466
            %1468 = vset.pattern.permute.xlu0 0
            %1469 = vperm.xlu0 %1468, %v1462
            %v1470 = vpop.permute.xlu0 %1469
            %1471 = vset.pattern.permute.xlu0 0
            %1472 = vperm.xlu0 %1471, %v1463
            %v1473 = vpop.permute.xlu0 %1472
            %1474 = vset.pattern.permute.xlu0 0
            %1475 = vperm.xlu0 %1474, %v1464
            %v1476 = vpop.permute.xlu0 %1475
            %vm1477 = vcmp.eq.s32.totalorder %v1467, 1
            %vm1478 = vcmp.eq.s32.totalorder %v1470, 1
            %vm1479 = vcmp.eq.s32.totalorder %v1473, 1
            %vm1480 = vcmp.eq.s32.totalorder %v1476, 1
            %v1481 = vsel %vm1477, %v600, -3.4028235e+38
            %v1482 = vsel %vm1478, %v603, -3.4028235e+38
            %v1483 = vsel %vm1479, %v608, -3.4028235e+38
            %v1484 = vsel %vm1480, %v611, -3.4028235e+38
            %v1485 = vmax.f32 %v1481, %v1482
            %v1486 = vmax.f32 %v1483, %v1484
            %v1487 = vmax.f32 %v1485, %v1486
            %v1488 = vrot.slane %v1487, 4
            %v1489 = vmax.f32 %v1487, %v1488
            %v1490 = vrot.slane %v1489, 2
            %v1491 = vmax.f32 %v1489, %v1490
            %v1492 = vrot.slane %v1491, 1
            %v1493 = vmax.f32 %v1491, %v1492
            %s1494 = sadd.s32 %s1338, 4
            %v1495 = vstv %s1494
            %vm1496 = vcmp.eq.s32.totalorder %v638, %v1495
            %vm1497 = vcmp.eq.s32.totalorder %v639, %v1495
            %vm1498 = vcmp.eq.s32.totalorder %v640, %v1495
            %vm1499 = vcmp.eq.s32.totalorder %v641, %v1495
            %v1500 = vsel %vm1496, 1, 0
            %v1501 = vsel %vm1497, 1, 0
            %v1502 = vsel %vm1498, 1, 0
            %v1503 = vsel %vm1499, 1, 0
            %1504 = vset.pattern.permute.xlu0 0
            %1505 = vperm.xlu0 %1504, %v1500
            %v1506 = vpop.permute.xlu0 %1505
            %1507 = vset.pattern.permute.xlu0 0
            %1508 = vperm.xlu0 %1507, %v1501
            %v1509 = vpop.permute.xlu0 %1508
            %1510 = vset.pattern.permute.xlu0 0
            %1511 = vperm.xlu0 %1510, %v1502
            %v1512 = vpop.permute.xlu0 %1511
            %1513 = vset.pattern.permute.xlu0 0
            %1514 = vperm.xlu0 %1513, %v1503
            %v1515 = vpop.permute.xlu0 %1514
            %vm1516 = vcmp.eq.s32.totalorder %v1506, 1
            %vm1517 = vcmp.eq.s32.totalorder %v1509, 1
            %vm1518 = vcmp.eq.s32.totalorder %v1512, 1
            %vm1519 = vcmp.eq.s32.totalorder %v1515, 1
            %v1520 = vsel %vm1516, %v600, -3.4028235e+38
            %v1521 = vsel %vm1517, %v603, -3.4028235e+38
            %v1522 = vsel %vm1518, %v608, -3.4028235e+38
            %v1523 = vsel %vm1519, %v611, -3.4028235e+38
            %v1524 = vmax.f32 %v1520, %v1521
            %v1525 = vmax.f32 %v1522, %v1523
            %v1526 = vmax.f32 %v1524, %v1525
            %v1527 = vrot.slane %v1526, 4
            %v1528 = vmax.f32 %v1526, %v1527
            %v1529 = vrot.slane %v1528, 2
            %v1530 = vmax.f32 %v1528, %v1529
            %v1531 = vrot.slane %v1530, 1
            %v1532 = vmax.f32 %v1530, %v1531
            %s1533 = sadd.s32 %s1338, 5
            %v1534 = vstv %s1533
            %vm1535 = vcmp.eq.s32.totalorder %v638, %v1534
            %vm1536 = vcmp.eq.s32.totalorder %v639, %v1534
            %vm1537 = vcmp.eq.s32.totalorder %v640, %v1534
            %vm1538 = vcmp.eq.s32.totalorder %v641, %v1534
            %v1539 = vsel %vm1535, 1, 0
            %v1540 = vsel %vm1536, 1, 0
            %v1541 = vsel %vm1537, 1, 0
            %v1542 = vsel %vm1538, 1, 0
            %1543 = vset.pattern.permute.xlu0 0
            %1544 = vperm.xlu0 %1543, %v1539
            %v1545 = vpop.permute.xlu0 %1544
            %1546 = vset.pattern.permute.xlu0 0
            %1547 = vperm.xlu0 %1546, %v1540
            %v1548 = vpop.permute.xlu0 %1547
            %1549 = vset.pattern.permute.xlu0 0
            %1550 = vperm.xlu0 %1549, %v1541
            %v1551 = vpop.permute.xlu0 %1550
            %1552 = vset.pattern.permute.xlu0 0
            %1553 = vperm.xlu0 %1552, %v1542
            %v1554 = vpop.permute.xlu0 %1553
            %vm1555 = vcmp.eq.s32.totalorder %v1545, 1
            %vm1556 = vcmp.eq.s32.totalorder %v1548, 1
            %vm1557 = vcmp.eq.s32.totalorder %v1551, 1
            %vm1558 = vcmp.eq.s32.totalorder %v1554, 1
            %v1559 = vsel %vm1555, %v600, -3.4028235e+38
            %v1560 = vsel %vm1556, %v603, -3.4028235e+38
            %v1561 = vsel %vm1557, %v608, -3.4028235e+38
            %v1562 = vsel %vm1558, %v611, -3.4028235e+38
            %v1563 = vmax.f32 %v1559, %v1560
            %v1564 = vmax.f32 %v1561, %v1562
            %v1565 = vmax.f32 %v1563, %v1564
            %v1566 = vrot.slane %v1565, 4
            %v1567 = vmax.f32 %v1565, %v1566
            %v1568 = vrot.slane %v1567, 2
            %v1569 = vmax.f32 %v1567, %v1568
            %v1570 = vrot.slane %v1569, 1
            %v1571 = vmax.f32 %v1569, %v1570
            %s1572 = sadd.s32 %s1338, 6
            %v1573 = vstv %s1572
            %vm1574 = vcmp.eq.s32.totalorder %v638, %v1573
            %vm1575 = vcmp.eq.s32.totalorder %v639, %v1573
            %vm1576 = vcmp.eq.s32.totalorder %v640, %v1573
            %vm1577 = vcmp.eq.s32.totalorder %v641, %v1573
            %v1578 = vsel %vm1574, 1, 0
            %v1579 = vsel %vm1575, 1, 0
            %v1580 = vsel %vm1576, 1, 0
            %v1581 = vsel %vm1577, 1, 0
            %1582 = vset.pattern.permute.xlu0 0
            %1583 = vperm.xlu0 %1582, %v1578
            %v1584 = vpop.permute.xlu0 %1583
            %1585 = vset.pattern.permute.xlu0 0
            %1586 = vperm.xlu0 %1585, %v1579
            %v1587 = vpop.permute.xlu0 %1586
            %1588 = vset.pattern.permute.xlu0 0
            %1589 = vperm.xlu0 %1588, %v1580
            %v1590 = vpop.permute.xlu0 %1589
            %1591 = vset.pattern.permute.xlu0 0
            %1592 = vperm.xlu0 %1591, %v1581
            %v1593 = vpop.permute.xlu0 %1592
            %vm1594 = vcmp.eq.s32.totalorder %v1584, 1
            %vm1595 = vcmp.eq.s32.totalorder %v1587, 1
            %vm1596 = vcmp.eq.s32.totalorder %v1590, 1
            %vm1597 = vcmp.eq.s32.totalorder %v1593, 1
            %v1598 = vsel %vm1594, %v600, -3.4028235e+38
            %v1599 = vsel %vm1595, %v603, -3.4028235e+38
            %v1600 = vsel %vm1596, %v608, -3.4028235e+38
            %v1601 = vsel %vm1597, %v611, -3.4028235e+38
            %v1602 = vmax.f32 %v1598, %v1599
            %v1603 = vmax.f32 %v1600, %v1601
            %v1604 = vmax.f32 %v1602, %v1603
            %v1605 = vrot.slane %v1604, 4
            %v1606 = vmax.f32 %v1604, %v1605
            %v1607 = vrot.slane %v1606, 2
            %v1608 = vmax.f32 %v1606, %v1607
            %v1609 = vrot.slane %v1608, 1
            %v1610 = vmax.f32 %v1608, %v1609
            %s1611 = sadd.s32 %s1338, 7
            %v1612 = vstv %s1611
            %vm1613 = vcmp.eq.s32.totalorder %v638, %v1612
            %vm1614 = vcmp.eq.s32.totalorder %v639, %v1612
            %vm1615 = vcmp.eq.s32.totalorder %v640, %v1612
            %vm1616 = vcmp.eq.s32.totalorder %v641, %v1612
            %v1617 = vsel %vm1613, 1, 0
            %v1618 = vsel %vm1614, 1, 0
            %v1619 = vsel %vm1615, 1, 0
            %v1620 = vsel %vm1616, 1, 0
            %1621 = vset.pattern.permute.xlu0 0
            %1622 = vperm.xlu0 %1621, %v1617
            %v1623 = vpop.permute.xlu0 %1622
            %1624 = vset.pattern.permute.xlu0 0
            %1625 = vperm.xlu0 %1624, %v1618
            %v1626 = vpop.permute.xlu0 %1625
            %1627 = vset.pattern.permute.xlu0 0
            %1628 = vperm.xlu0 %1627, %v1619
            %v1629 = vpop.permute.xlu0 %1628
            %1630 = vset.pattern.permute.xlu0 0
            %1631 = vperm.xlu0 %1630, %v1620
            %v1632 = vpop.permute.xlu0 %1631
            %vm1633 = vcmp.eq.s32.totalorder %v1623, 1
            %vm1634 = vcmp.eq.s32.totalorder %v1626, 1
            %vm1635 = vcmp.eq.s32.totalorder %v1629, 1
            %vm1636 = vcmp.eq.s32.totalorder %v1632, 1
            %v1637 = vsel %vm1633, %v600, -3.4028235e+38
            %v1638 = vsel %vm1634, %v603, -3.4028235e+38
            %v1639 = vsel %vm1635, %v608, -3.4028235e+38
            %v1640 = vsel %vm1636, %v611, -3.4028235e+38
            %v1641 = vmax.f32 %v1637, %v1638
            %v1642 = vmax.f32 %v1639, %v1640
            %v1643 = vmax.f32 %v1641, %v1642
            %v1644 = vrot.slane %v1643, 4
            %v1645 = vmax.f32 %v1643, %v1644
            %v1646 = vrot.slane %v1645, 2
            %v1647 = vmax.f32 %v1645, %v1646
            %v1648 = vrot.slane %v1647, 1
            %v1649 = vmax.f32 %v1647, %v1648
            %vm1650 = vcmask 1040384
            %v1651 = vsel %vm1650, %v1376, %v1415
            %vm1652 = vcmask 1041408
            %v1653 = vsel %vm1652, %v1651, %v1454
            %vm1654 = vcmask 1042432
            %v1655 = vsel %vm1654, %v1653, %v1493
            %vm1656 = vcmask 1043456
            %v1657 = vsel %vm1656, %v1655, %v1532
            %vm1658 = vcmask 1044480
            %v1659 = vsel %vm1658, %v1657, %v1571
            %vm1660 = vcmask 1045504
            %v1661 = vsel %vm1660, %v1659, %v1610
            %vm1662 = vcmask 1046528
            %v1663 = vsel %vm1662, %v1661, %v1649
            %s1664 = scalar_lea.vmem %s334, %s1338 [#allocation7]
            %v1665 = vld [vmem:[%s1664] sm:$0xff]
            %v1666 = vmax.f32 %v1665, %v1663
            %1667 = vst [vmem:[%s1664] sm:$0xff] %v1666
          $region63: #{tpu_custom_call.1} parent=43 // loop_footer
            %s1334 = sadd.s32 %s1332, 1
          $region64: #{tpu_custom_call.1} parent=43 // loop_footer_branch
            %1331 = sbr.rel target = $region60
          $region65: #{tpu_custom_call.1} parent=43 // loop_exit
            _
          %s1668 = sadd.s32 %s648, 3
          %s1669 = sld [smem:[#allocation5 + %s1668]]
          %s1670 = sld [smem:[#allocation6 + %s1668]]
          // While loop
          $region66: #{tpu_custom_call.1} parent=43 // loop_pre_header
            _
          $region67: #{tpu_custom_call.1} parent=43 // loop_header
            %s1672 = sphi 0, %s1674
            %p1673 = scmp.ge.s32.totalorder %s1672, %s1670
          $region68: #{tpu_custom_call.1} parent=43 // loop_header_branch
            %1676 = sbr.rel (%p1673) target = $region72
          $region69: #{tpu_custom_call.1} parent=43 // loop_body
            %s1677 = sadd.s32 %s1669, %s1672
            %s1678 = smul.u32 %s1677, 8
            %v1679 = vstv %s1678
            %vm1680 = vcmp.eq.s32.totalorder %v642, %v1679
            %vm1681 = vcmp.eq.s32.totalorder %v643, %v1679
            %vm1682 = vcmp.eq.s32.totalorder %v644, %v1679
            %vm1683 = vcmp.eq.s32.totalorder %v645, %v1679
            %v1684 = vsel %vm1680, 1, 0
            %v1685 = vsel %vm1681, 1, 0
            %v1686 = vsel %vm1682, 1, 0
            %v1687 = vsel %vm1683, 1, 0
            %1688 = vset.pattern.permute.xlu0 0
            %1689 = vperm.xlu0 %1688, %v1684
            %v1690 = vpop.permute.xlu0 %1689
            %1691 = vset.pattern.permute.xlu0 0
            %1692 = vperm.xlu0 %1691, %v1685
            %v1693 = vpop.permute.xlu0 %1692
            %1694 = vset.pattern.permute.xlu0 0
            %1695 = vperm.xlu0 %1694, %v1686
            %v1696 = vpop.permute.xlu0 %1695
            %1697 = vset.pattern.permute.xlu0 0
            %1698 = vperm.xlu0 %1697, %v1687
            %v1699 = vpop.permute.xlu0 %1698
            %vm1700 = vcmp.eq.s32.totalorder %v1690, 1
            %vm1701 = vcmp.eq.s32.totalorder %v1693, 1
            %vm1702 = vcmp.eq.s32.totalorder %v1696, 1
            %vm1703 = vcmp.eq.s32.totalorder %v1699, 1
            %v1704 = vsel %vm1700, %v616, -3.4028235e+38
            %v1705 = vsel %vm1701, %v619, -3.4028235e+38
            %v1706 = vsel %vm1702, %v624, -3.4028235e+38
            %v1707 = vsel %vm1703, %v627, -3.4028235e+38
            %v1708 = vmax.f32 %v1704, %v1705
            %v1709 = vmax.f32 %v1706, %v1707
            %v1710 = vmax.f32 %v1708, %v1709
            %v1711 = vrot.slane %v1710, 4
            %v1712 = vmax.f32 %v1710, %v1711
            %v1713 = vrot.slane %v1712, 2
            %v1714 = vmax.f32 %v1712, %v1713
            %v1715 = vrot.slane %v1714, 1
            %v1716 = vmax.f32 %v1714, %v1715
            %s1717 = sadd.s32 %s1678, 1
            %v1718 = vstv %s1717
            %vm1719 = vcmp.eq.s32.totalorder %v642, %v1718
            %vm1720 = vcmp.eq.s32.totalorder %v643, %v1718
            %vm1721 = vcmp.eq.s32.totalorder %v644, %v1718
            %vm1722 = vcmp.eq.s32.totalorder %v645, %v1718
            %v1723 = vsel %vm1719, 1, 0
            %v1724 = vsel %vm1720, 1, 0
            %v1725 = vsel %vm1721, 1, 0
            %v1726 = vsel %vm1722, 1, 0
            %1727 = vset.pattern.permute.xlu0 0
            %1728 = vperm.xlu0 %1727, %v1723
            %v1729 = vpop.permute.xlu0 %1728
            %1730 = vset.pattern.permute.xlu0 0
            %1731 = vperm.xlu0 %1730, %v1724
            %v1732 = vpop.permute.xlu0 %1731
            %1733 = vset.pattern.permute.xlu0 0
            %1734 = vperm.xlu0 %1733, %v1725
            %v1735 = vpop.permute.xlu0 %1734
            %1736 = vset.pattern.permute.xlu0 0
            %1737 = vperm.xlu0 %1736, %v1726
            %v1738 = vpop.permute.xlu0 %1737
            %vm1739 = vcmp.eq.s32.totalorder %v1729, 1
            %vm1740 = vcmp.eq.s32.totalorder %v1732, 1
            %vm1741 = vcmp.eq.s32.totalorder %v1735, 1
            %vm1742 = vcmp.eq.s32.totalorder %v1738, 1
            %v1743 = vsel %vm1739, %v616, -3.4028235e+38
            %v1744 = vsel %vm1740, %v619, -3.4028235e+38
            %v1745 = vsel %vm1741, %v624, -3.4028235e+38
            %v1746 = vsel %vm1742, %v627, -3.4028235e+38
            %v1747 = vmax.f32 %v1743, %v1744
            %v1748 = vmax.f32 %v1745, %v1746
            %v1749 = vmax.f32 %v1747, %v1748
            %v1750 = vrot.slane %v1749, 4
            %v1751 = vmax.f32 %v1749, %v1750
            %v1752 = vrot.slane %v1751, 2
            %v1753 = vmax.f32 %v1751, %v1752
            %v1754 = vrot.slane %v1753, 1
            %v1755 = vmax.f32 %v1753, %v1754
            %s1756 = sadd.s32 %s1678, 2
            %v1757 = vstv %s1756
            %vm1758 = vcmp.eq.s32.totalorder %v642, %v1757
            %vm1759 = vcmp.eq.s32.totalorder %v643, %v1757
            %vm1760 = vcmp.eq.s32.totalorder %v644, %v1757
            %vm1761 = vcmp.eq.s32.totalorder %v645, %v1757
            %v1762 = vsel %vm1758, 1, 0
            %v1763 = vsel %vm1759, 1, 0
            %v1764 = vsel %vm1760, 1, 0
            %v1765 = vsel %vm1761, 1, 0
            %1766 = vset.pattern.permute.xlu0 0
            %1767 = vperm.xlu0 %1766, %v1762
            %v1768 = vpop.permute.xlu0 %1767
            %1769 = vset.pattern.permute.xlu0 0
            %1770 = vperm.xlu0 %1769, %v1763
            %v1771 = vpop.permute.xlu0 %1770
            %1772 = vset.pattern.permute.xlu0 0
            %1773 = vperm.xlu0 %1772, %v1764
            %v1774 = vpop.permute.xlu0 %1773
            %1775 = vset.pattern.permute.xlu0 0
            %1776 = vperm.xlu0 %1775, %v1765
            %v1777 = vpop.permute.xlu0 %1776
            %vm1778 = vcmp.eq.s32.totalorder %v1768, 1
            %vm1779 = vcmp.eq.s32.totalorder %v1771, 1
            %vm1780 = vcmp.eq.s32.totalorder %v1774, 1
            %vm1781 = vcmp.eq.s32.totalorder %v1777, 1
            %v1782 = vsel %vm1778, %v616, -3.4028235e+38
            %v1783 = vsel %vm1779, %v619, -3.4028235e+38
            %v1784 = vsel %vm1780, %v624, -3.4028235e+38
            %v1785 = vsel %vm1781, %v627, -3.4028235e+38
            %v1786 = vmax.f32 %v1782, %v1783
            %v1787 = vmax.f32 %v1784, %v1785
            %v1788 = vmax.f32 %v1786, %v1787
            %v1789 = vrot.slane %v1788, 4
            %v1790 = vmax.f32 %v1788, %v1789
            %v1791 = vrot.slane %v1790, 2
            %v1792 = vmax.f32 %v1790, %v1791
            %v1793 = vrot.slane %v1792, 1
            %v1794 = vmax.f32 %v1792, %v1793
            %s1795 = sadd.s32 %s1678, 3
            %v1796 = vstv %s1795
            %vm1797 = vcmp.eq.s32.totalorder %v642, %v1796
            %vm1798 = vcmp.eq.s32.totalorder %v643, %v1796
            %vm1799 = vcmp.eq.s32.totalorder %v644, %v1796
            %vm1800 = vcmp.eq.s32.totalorder %v645, %v1796
            %v1801 = vsel %vm1797, 1, 0
            %v1802 = vsel %vm1798, 1, 0
            %v1803 = vsel %vm1799, 1, 0
            %v1804 = vsel %vm1800, 1, 0
            %1805 = vset.pattern.permute.xlu0 0
            %1806 = vperm.xlu0 %1805, %v1801
            %v1807 = vpop.permute.xlu0 %1806
            %1808 = vset.pattern.permute.xlu0 0
            %1809 = vperm.xlu0 %1808, %v1802
            %v1810 = vpop.permute.xlu0 %1809
            %1811 = vset.pattern.permute.xlu0 0
            %1812 = vperm.xlu0 %1811, %v1803
            %v1813 = vpop.permute.xlu0 %1812
            %1814 = vset.pattern.permute.xlu0 0
            %1815 = vperm.xlu0 %1814, %v1804
            %v1816 = vpop.permute.xlu0 %1815
            %vm1817 = vcmp.eq.s32.totalorder %v1807, 1
            %vm1818 = vcmp.eq.s32.totalorder %v1810, 1
            %vm1819 = vcmp.eq.s32.totalorder %v1813, 1
            %vm1820 = vcmp.eq.s32.totalorder %v1816, 1
            %v1821 = vsel %vm1817, %v616, -3.4028235e+38
            %v1822 = vsel %vm1818, %v619, -3.4028235e+38
            %v1823 = vsel %vm1819, %v624, -3.4028235e+38
            %v1824 = vsel %vm1820, %v627, -3.4028235e+38
            %v1825 = vmax.f32 %v1821, %v1822
            %v1826 = vmax.f32 %v1823, %v1824
            %v1827 = vmax.f32 %v1825, %v1826
            %v1828 = vrot.slane %v1827, 4
            %v1829 = vmax.f32 %v1827, %v1828
            %v1830 = vrot.slane %v1829, 2
            %v1831 = vmax.f32 %v1829, %v1830
            %v1832 = vrot.slane %v1831, 1
            %v1833 = vmax.f32 %v1831, %v1832
            %s1834 = sadd.s32 %s1678, 4
            %v1835 = vstv %s1834
            %vm1836 = vcmp.eq.s32.totalorder %v642, %v1835
            %vm1837 = vcmp.eq.s32.totalorder %v643, %v1835
            %vm1838 = vcmp.eq.s32.totalorder %v644, %v1835
            %vm1839 = vcmp.eq.s32.totalorder %v645, %v1835
            %v1840 = vsel %vm1836, 1, 0
            %v1841 = vsel %vm1837, 1, 0
            %v1842 = vsel %vm1838, 1, 0
            %v1843 = vsel %vm1839, 1, 0
            %1844 = vset.pattern.permute.xlu0 0
            %1845 = vperm.xlu0 %1844, %v1840
            %v1846 = vpop.permute.xlu0 %1845
            %1847 = vset.pattern.permute.xlu0 0
            %1848 = vperm.xlu0 %1847, %v1841
            %v1849 = vpop.permute.xlu0 %1848
            %1850 = vset.pattern.permute.xlu0 0
            %1851 = vperm.xlu0 %1850, %v1842
            %v1852 = vpop.permute.xlu0 %1851
            %1853 = vset.pattern.permute.xlu0 0
            %1854 = vperm.xlu0 %1853, %v1843
            %v1855 = vpop.permute.xlu0 %1854
            %vm1856 = vcmp.eq.s32.totalorder %v1846, 1
            %vm1857 = vcmp.eq.s32.totalorder %v1849, 1
            %vm1858 = vcmp.eq.s32.totalorder %v1852, 1
            %vm1859 = vcmp.eq.s32.totalorder %v1855, 1
            %v1860 = vsel %vm1856, %v616, -3.4028235e+38
            %v1861 = vsel %vm1857, %v619, -3.4028235e+38
            %v1862 = vsel %vm1858, %v624, -3.4028235e+38
            %v1863 = vsel %vm1859, %v627, -3.4028235e+38
            %v1864 = vmax.f32 %v1860, %v1861
            %v1865 = vmax.f32 %v1862, %v1863
            %v1866 = vmax.f32 %v1864, %v1865
            %v1867 = vrot.slane %v1866, 4
            %v1868 = vmax.f32 %v1866, %v1867
            %v1869 = vrot.slane %v1868, 2
            %v1870 = vmax.f32 %v1868, %v1869
            %v1871 = vrot.slane %v1870, 1
            %v1872 = vmax.f32 %v1870, %v1871
            %s1873 = sadd.s32 %s1678, 5
            %v1874 = vstv %s1873
            %vm1875 = vcmp.eq.s32.totalorder %v642, %v1874
            %vm1876 = vcmp.eq.s32.totalorder %v643, %v1874
            %vm1877 = vcmp.eq.s32.totalorder %v644, %v1874
            %vm1878 = vcmp.eq.s32.totalorder %v645, %v1874
            %v1879 = vsel %vm1875, 1, 0
            %v1880 = vsel %vm1876, 1, 0
            %v1881 = vsel %vm1877, 1, 0
            %v1882 = vsel %vm1878, 1, 0
            %1883 = vset.pattern.permute.xlu0 0
            %1884 = vperm.xlu0 %1883, %v1879
            %v1885 = vpop.permute.xlu0 %1884
            %1886 = vset.pattern.permute.xlu0 0
            %1887 = vperm.xlu0 %1886, %v1880
            %v1888 = vpop.permute.xlu0 %1887
            %1889 = vset.pattern.permute.xlu0 0
            %1890 = vperm.xlu0 %1889, %v1881
            %v1891 = vpop.permute.xlu0 %1890
            %1892 = vset.pattern.permute.xlu0 0
            %1893 = vperm.xlu0 %1892, %v1882
            %v1894 = vpop.permute.xlu0 %1893
            %vm1895 = vcmp.eq.s32.totalorder %v1885, 1
            %vm1896 = vcmp.eq.s32.totalorder %v1888, 1
            %vm1897 = vcmp.eq.s32.totalorder %v1891, 1
            %vm1898 = vcmp.eq.s32.totalorder %v1894, 1
            %v1899 = vsel %vm1895, %v616, -3.4028235e+38
            %v1900 = vsel %vm1896, %v619, -3.4028235e+38
            %v1901 = vsel %vm1897, %v624, -3.4028235e+38
            %v1902 = vsel %vm1898, %v627, -3.4028235e+38
            %v1903 = vmax.f32 %v1899, %v1900
            %v1904 = vmax.f32 %v1901, %v1902
            %v1905 = vmax.f32 %v1903, %v1904
            %v1906 = vrot.slane %v1905, 4
            %v1907 = vmax.f32 %v1905, %v1906
            %v1908 = vrot.slane %v1907, 2
            %v1909 = vmax.f32 %v1907, %v1908
            %v1910 = vrot.slane %v1909, 1
            %v1911 = vmax.f32 %v1909, %v1910
            %s1912 = sadd.s32 %s1678, 6
            %v1913 = vstv %s1912
            %vm1914 = vcmp.eq.s32.totalorder %v642, %v1913
            %vm1915 = vcmp.eq.s32.totalorder %v643, %v1913
            %vm1916 = vcmp.eq.s32.totalorder %v644, %v1913
            %vm1917 = vcmp.eq.s32.totalorder %v645, %v1913
            %v1918 = vsel %vm1914, 1, 0
            %v1919 = vsel %vm1915, 1, 0
            %v1920 = vsel %vm1916, 1, 0
            %v1921 = vsel %vm1917, 1, 0
            %1922 = vset.pattern.permute.xlu0 0
            %1923 = vperm.xlu0 %1922, %v1918
            %v1924 = vpop.permute.xlu0 %1923
            %1925 = vset.pattern.permute.xlu0 0
            %1926 = vperm.xlu0 %1925, %v1919
            %v1927 = vpop.permute.xlu0 %1926
            %1928 = vset.pattern.permute.xlu0 0
            %1929 = vperm.xlu0 %1928, %v1920
            %v1930 = vpop.permute.xlu0 %1929
            %1931 = vset.pattern.permute.xlu0 0
            %1932 = vperm.xlu0 %1931, %v1921
            %v1933 = vpop.permute.xlu0 %1932
            %vm1934 = vcmp.eq.s32.totalorder %v1924, 1
            %vm1935 = vcmp.eq.s32.totalorder %v1927, 1
            %vm1936 = vcmp.eq.s32.totalorder %v1930, 1
            %vm1937 = vcmp.eq.s32.totalorder %v1933, 1
            %v1938 = vsel %vm1934, %v616, -3.4028235e+38
            %v1939 = vsel %vm1935, %v619, -3.4028235e+38
            %v1940 = vsel %vm1936, %v624, -3.4028235e+38
            %v1941 = vsel %vm1937, %v627, -3.4028235e+38
            %v1942 = vmax.f32 %v1938, %v1939
            %v1943 = vmax.f32 %v1940, %v1941
            %v1944 = vmax.f32 %v1942, %v1943
            %v1945 = vrot.slane %v1944, 4
            %v1946 = vmax.f32 %v1944, %v1945
            %v1947 = vrot.slane %v1946, 2
            %v1948 = vmax.f32 %v1946, %v1947
            %v1949 = vrot.slane %v1948, 1
            %v1950 = vmax.f32 %v1948, %v1949
            %s1951 = sadd.s32 %s1678, 7
            %v1952 = vstv %s1951
            %vm1953 = vcmp.eq.s32.totalorder %v642, %v1952
            %vm1954 = vcmp.eq.s32.totalorder %v643, %v1952
            %vm1955 = vcmp.eq.s32.totalorder %v644, %v1952
            %vm1956 = vcmp.eq.s32.totalorder %v645, %v1952
            %v1957 = vsel %vm1953, 1, 0
            %v1958 = vsel %vm1954, 1, 0
            %v1959 = vsel %vm1955, 1, 0
            %v1960 = vsel %vm1956, 1, 0
            %1961 = vset.pattern.permute.xlu0 0
            %1962 = vperm.xlu0 %1961, %v1957
            %v1963 = vpop.permute.xlu0 %1962
            %1964 = vset.pattern.permute.xlu0 0
            %1965 = vperm.xlu0 %1964, %v1958
            %v1966 = vpop.permute.xlu0 %1965
            %1967 = vset.pattern.permute.xlu0 0
            %1968 = vperm.xlu0 %1967, %v1959
            %v1969 = vpop.permute.xlu0 %1968
            %1970 = vset.pattern.permute.xlu0 0
            %1971 = vperm.xlu0 %1970, %v1960
            %v1972 = vpop.permute.xlu0 %1971
            %vm1973 = vcmp.eq.s32.totalorder %v1963, 1
            %vm1974 = vcmp.eq.s32.totalorder %v1966, 1
            %vm1975 = vcmp.eq.s32.totalorder %v1969, 1
            %vm1976 = vcmp.eq.s32.totalorder %v1972, 1
            %v1977 = vsel %vm1973, %v616, -3.4028235e+38
            %v1978 = vsel %vm1974, %v619, -3.4028235e+38
            %v1979 = vsel %vm1975, %v624, -3.4028235e+38
            %v1980 = vsel %vm1976, %v627, -3.4028235e+38
            %v1981 = vmax.f32 %v1977, %v1978
            %v1982 = vmax.f32 %v1979, %v1980
            %v1983 = vmax.f32 %v1981, %v1982
            %v1984 = vrot.slane %v1983, 4
            %v1985 = vmax.f32 %v1983, %v1984
            %v1986 = vrot.slane %v1985, 2
            %v1987 = vmax.f32 %v1985, %v1986
            %v1988 = vrot.slane %v1987, 1
            %v1989 = vmax.f32 %v1987, %v1988
            %vm1990 = vcmask 1040384
            %v1991 = vsel %vm1990, %v1716, %v1755
            %vm1992 = vcmask 1041408
            %v1993 = vsel %vm1992, %v1991, %v1794
            %vm1994 = vcmask 1042432
            %v1995 = vsel %vm1994, %v1993, %v1833
            %vm1996 = vcmask 1043456
            %v1997 = vsel %vm1996, %v1995, %v1872
            %vm1998 = vcmask 1044480
            %v1999 = vsel %vm1998, %v1997, %v1911
            %vm2000 = vcmask 1045504
            %v2001 = vsel %vm2000, %v1999, %v1950
            %vm2002 = vcmask 1046528
            %v2003 = vsel %vm2002, %v2001, %v1989
            %s2004 = scalar_lea.vmem %s334, %s1678 [#allocation7]
            %v2005 = vld [vmem:[%s2004] sm:$0xff]
            %v2006 = vmax.f32 %v2005, %v2003
            %2007 = vst [vmem:[%s2004] sm:$0xff] %v2006
          $region70: #{tpu_custom_call.1} parent=43 // loop_footer
            %s1674 = sadd.s32 %s1672, 1
          $region71: #{tpu_custom_call.1} parent=43 // loop_footer_branch
            %1671 = sbr.rel target = $region67
          $region72: #{tpu_custom_call.1} parent=43 // loop_exit
            _
        $region44: #{tpu_custom_call.1} parent=35 // pred_fallthru
          _
        %s2008 = ssub.s32 %s380, 1
        %p2009 = scmp.eq.s32.totalorder %s47, %s2008
        // Predicated region
        $region73: #{tpu_custom_call.1} parent=35 // pred_check
          %p2010 = pneg %p2009
        $region74: #{tpu_custom_call.1} parent=35 // pred_check_branch
          %2012 = sbr.rel (%p2010) target = $region76
        $region75: #{tpu_custom_call.1} parent=35 // pred_region
          %v2013 = vld [vmem:[%s334] sm:$0xff]
          %v2014 = vld [vmem:[%s334 + $0x8] sm:$0xff]
          %v2015 = vld [vmem:[%s334 + $0x10] sm:$0xff]
          %v2016 = vld [vmem:[%s334 + $0x18] sm:$0xff]
          %v2017 = vld [vmem:[%s334 + $0x20] sm:$0xff]
          %v2018 = vld [vmem:[%s334 + $0x28] sm:$0xff]
          %v2019 = vld [vmem:[%s334 + $0x30] sm:$0xff]
          %v2020 = vld [vmem:[%s334 + $0x38] sm:$0xff]
          %v2021 = vld [vmem:[%s334 + $0x40] sm:$0xff]
          %v2022 = vld [vmem:[%s334 + $0x48] sm:$0xff]
          %v2023 = vld [vmem:[%s334 + $0x50] sm:$0xff]
          %v2024 = vld [vmem:[%s334 + $0x58] sm:$0xff]
          %v2025 = vld [vmem:[%s334 + $0x60] sm:$0xff]
          %v2026 = vld [vmem:[%s334 + $0x68] sm:$0xff]
          %v2027 = vld [vmem:[%s334 + $0x70] sm:$0xff]
          %v2028 = vld [vmem:[%s334 + $0x78] sm:$0xff]
          %v2029 = vld [vmem:[%s377] sm:$0x1]
          %v2031 = vlaneseq
          %v2032 = vshrl.u32 %v2031, 7
          %v2033 = vsub.s32 0, %v2032
          %v2034 = vrot.slane %v2029, %v2033
          %v2036 = vadd.f32 %v2013, %v2034
          %v2037 = vadd.f32 %v2014, %v2034
          %v2038 = vadd.f32 %v2015, %v2034
          %v2039 = vadd.f32 %v2016, %v2034
          %v2040 = vadd.f32 %v2017, %v2034
          %v2041 = vadd.f32 %v2018, %v2034
          %v2042 = vadd.f32 %v2019, %v2034
          %v2043 = vadd.f32 %v2020, %v2034
          %v2044 = vadd.f32 %v2021, %v2034
          %v2045 = vadd.f32 %v2022, %v2034
          %v2046 = vadd.f32 %v2023, %v2034
          %v2047 = vadd.f32 %v2024, %v2034
          %v2048 = vadd.f32 %v2025, %v2034
          %v2049 = vadd.f32 %v2026, %v2034
          %v2050 = vadd.f32 %v2027, %v2034
          %v2051 = vadd.f32 %v2028, %v2034
          %2052 = vst [vmem:[%s334] sm:$0xff] %v2036
          %2053 = vst [vmem:[%s334 + $0x8] sm:$0xff] %v2037
          %2054 = vst [vmem:[%s334 + $0x10] sm:$0xff] %v2038
          %2055 = vst [vmem:[%s334 + $0x18] sm:$0xff] %v2039
          %2056 = vst [vmem:[%s334 + $0x20] sm:$0xff] %v2040
          %2057 = vst [vmem:[%s334 + $0x28] sm:$0xff] %v2041
          %2058 = vst [vmem:[%s334 + $0x30] sm:$0xff] %v2042
          %2059 = vst [vmem:[%s334 + $0x38] sm:$0xff] %v2043
          %2060 = vst [vmem:[%s334 + $0x40] sm:$0xff] %v2044
          %2061 = vst [vmem:[%s334 + $0x48] sm:$0xff] %v2045
          %2062 = vst [vmem:[%s334 + $0x50] sm:$0xff] %v2046
          %2063 = vst [vmem:[%s334 + $0x58] sm:$0xff] %v2047
          %2064 = vst [vmem:[%s334 + $0x60] sm:$0xff] %v2048
          %2065 = vst [vmem:[%s334 + $0x68] sm:$0xff] %v2049
          %2066 = vst [vmem:[%s334 + $0x70] sm:$0xff] %v2050
          %2067 = vst [vmem:[%s334 + $0x78] sm:$0xff] %v2051
        $region76: #{tpu_custom_call.1} parent=35 // pred_fallthru
          _
        %s2068 = sand.u32 %s197, 1
        %s2069 = scalar_lea.sflag [#allocation8], %s2068
        %s2070 = sand.u32 %s197, 1
        %s2071 = smul.addr %s2070, 128
        %s2072 = scalar_lea.vmem [#allocation7], %s2071
        // Predicated region
        $region77: #{tpu_custom_call.1} parent=35 // pred_check
          %p2073 = pneg %p207
        $region78: #{tpu_custom_call.1} parent=35 // pred_check_branch
          %2075 = sbr.rel (%p2073) target = $region80
        $region79: #{tpu_custom_call.1} parent=35 // pred_region
          %s2076 = smul.u32 16, %s45
          %s2078 = ssub.s32 2048, 2048
          %2079 = vsyncadd %s2069, %s2078
          %s2080 = sadd.s32 %s46, %s2076
          %s2081 = smul.addr %s2080, 128
          %s2082 = scalar_lea.hbm %s8, %s2081
          %s2083 = sshll.u32 %s2072, 4
          %s2084 = int_to_ptr.vmem [resolvable:$true] %s2083
          %2089 = dma.vmem_to_hbm [thread:$0]  %s2084, 2048, %s2082, %s2069, 128, 128, 8
        $region80: #{tpu_custom_call.1} parent=35 // pred_fallthru
          _
      $region36: #{tpu_custom_call.1} parent=5 // pred_fallthru
        _
      %p2090 = scmp.le.s32.totalorder 2, %s35
      // Predicated region
      $region81: #{tpu_custom_call.1} parent=5 // pred_check
        %p2091 = pneg %p2090
      $region82: #{tpu_custom_call.1} parent=5 // pred_check_branch
        %2093 = sbr.rel (%p2091) target = $region84
      $region83: #{tpu_custom_call.1} parent=5 // pred_region
        %s2094 = ssub.s32 %s35, 2
        // Predicated region
        $region85: #{tpu_custom_call.1} parent=83 // pred_check
          %p2095 = pneg %p213
        $region86: #{tpu_custom_call.1} parent=83 // pred_check_branch
          %2097 = sbr.rel (%p2095) target = $region88
        $region87: #{tpu_custom_call.1} parent=83 // pred_region
          %s2098 = sand.u32 %s198, 1
          %s2099 = scalar_lea.sflag [#allocation8], %s2098
          %s2100 = sand.u32 %s198, 1
          %s2101 = smul.addr %s2100, 128
          %s2102 = scalar_lea.vmem [#allocation7], %s2101
          %2103 = dma.done %s2099, 2048
        $region88: #{tpu_custom_call.1} parent=83 // pred_fallthru
          _
      $region84: #{tpu_custom_call.1} parent=5 // pred_fallthru
        _
    $region6: #{tpu_custom_call.1} parent=1 // loop_footer
      %s39 = sadd.s32 1, %s35
    $region7: #{tpu_custom_call.1} parent=1 // loop_footer_branch
      %34 = sbr.rel target = $region3
    $region8: #{tpu_custom_call.1} parent=1 // loop_exit
      _
    %2104 = vsyncpa [#allocation8], 1
    %s2105 = scalar_lea.sflag [#allocation8], 1
    %2106 = vsyncpa %s2105, 1

</llo_original>
